<compile_context>
chip_gen: v7x
topology: tpu7x:2x2x1
jax: 0.10.0
libtpu: 0.0.40
codegen_flags: <defaults>
</compile_context>

<pallas_src>
import functools

import jax
import jax.numpy as jnp
from jax import lax
from jax.experimental import pallas as pl
from jax.experimental.pallas import tpu as pltpu


# --------------------------------------------------------------------------- #
# Kernel
# --------------------------------------------------------------------------- #
def aspp_kernel(xf_ref,                      # (1, Cin, HW)      bf16  full image (resident per b)
                wconv_ref,                   # (Cout, Cin)       bf16  conv-branch weights
                sc_ref, bc_ref,              # (Cout, 1)         f32   folded BN scale/shift (conv)
                wproj_ref,                   # (Cout, Cin)       bf16  channel_proj weights
                sp_ref, bp_ref,              # (Cout, 1)         f32   folded BN scale/shift (proj)
                wqkv_ref,                    # (2*C8p+Cout,Cout) bf16  [Wq ; Wk ; gamma*Wv]
                bqkv_ref,                    # (2*C8p+Cout, 1)   f32   [bq ; bk ; gamma*bv]
                o_ref,                       # (1, Cout, TQ)     f32
                xp_ref, q_ref, k_ref, v_ref,  # scratch bf16: (Cout,HW)/(C8p,HW)/(C8p,HW)/(Cout,HW)
                *, use_bf16_exp):
    qt = pl.program_id(1)
    Cout = o_ref.shape[1]
    TQ = o_ref.shape[2]
    C8p = k_ref.shape[0]

    # ---- once per batch element: fused proj+BN+ReLU, then q/k/v in one matmul
    @pl.when(qt == 0)
    def _():
        x_full = xf_ref[0]                                              # (Cin, HW) bf16
        xp_full = jnp.dot(wproj_ref[...], x_full,
                          preferred_element_type=jnp.float32)           # (Cout, HW)
        xp_full = jnp.maximum(xp_full * sp_ref[...] + bp_ref[...], 0.0)
        xp_bf = xp_full.astype(jnp.bfloat16)
        xp_ref[...] = xp_bf
        qkv = jnp.dot(wqkv_ref[...], xp_bf,
                      preferred_element_type=jnp.float32) + bqkv_ref[...]  # (2C8p+Cout, HW)
        q_ref[...] = qkv[:C8p].astype(jnp.bfloat16)
        k_ref[...] = qkv[C8p:2 * C8p].astype(jnp.bfloat16)
        v_ref[...] = qkv[2 * C8p:].astype(jnp.bfloat16)

    # ---- per query tile -----------------------------------------------------
    start = pl.multiple_of(qt * TQ, 128)
    x_t = xf_ref[0, :, pl.ds(start, TQ)]                                # (Cin, TQ) bf16
    conv_t = jnp.dot(wconv_ref[...], x_t,
                     preferred_element_type=jnp.float32)                # (Cout, TQ)
    conv_t = jnp.maximum(conv_t * sc_ref[...] + bc_ref[...], 0.0)

    xp_t = xp_ref[:, pl.ds(start, TQ)]                                  # (Cout, TQ) bf16
    q_t = q_ref[:, pl.ds(start, TQ)]                                    # (C8p, TQ)  bf16

    # energy[i, j] = sum_c q[c, i] * k[c, j] -- contract channel dims directly
    energy = lax.dot_general(q_t, k_ref[...],
                             dimension_numbers=(((0,), (0,)), ((), ())),
                             preferred_element_type=jnp.float32)        # (TQ, HW)

    # softmax numerator (bf16 exp on v6e/v7x); normalization is deferred.
    m = jnp.max(energy, axis=-1, keepdims=True)
    z = energy - m
    if use_bf16_exp:
        p = jnp.exp(z.astype(jnp.bfloat16))
    else:
        p = jnp.exp(z)
    denom = jnp.sum(p, axis=-1, dtype=jnp.float32)                      # (TQ,)
    inv = pl.reciprocal(denom, approx=True)                             # (TQ,)  EUP

    p_mm = p if p.dtype == jnp.bfloat16 else p.astype(jnp.bfloat16)
    # out_un[c, i] = sum_j v[c, j] * p[i, j]   (gamma already folded into V)
    out_un = lax.dot_general(v_ref[...], p_mm,
                             dimension_numbers=(((1,), (1,)), ((), ())),
                             preferred_element_type=jnp.float32)        # (Cout, TQ)

    # result = conv_out * (gamma*out * xp); softmax normalization applied here.
    o_ref[0] = (conv_t * xp_t.astype(jnp.float32) * out_un
                * inv[None, :]).astype(o_ref.dtype)


# --------------------------------------------------------------------------- #
# Wrapper
# --------------------------------------------------------------------------- #
def _device_kind():
    try:
        return jax.devices()[0].device_kind.lower()
    except Exception:
        return ""


def _vmem_limit_bytes():
    """Derive a VMEM limit from the actual chip, leaving Mosaic headroom."""
    try:
        cap = int(pltpu.get_tpu_info().vmem_capacity_bytes)
    except Exception:
        return None                       # let the compiler use its default
    return max(32 << 20, min(cap - (16 << 20), 100 << 20))


def aspp_module_forward(x_nchw, fp, *, tq=None, use_bf16_exp=None):
    """x_nchw: (B, Cin, H, W) float32; fp: folded params.  Returns (B, Cout, H, W)."""
    B, Cin, H, W = x_nchw.shape
    HW = H * W
    Cout = fp["w_conv"].shape[0]
    C8p = (fp["w_qkv"].shape[0] - Cout) // 2

    kind = _device_kind()
    is_v7 = "v7" in kind
    if use_bf16_exp is None:
        use_bf16_exp = ("v6" in kind) or is_v7      # v5e has no bf16 EUP path

    if tq is None:
        # Larger tiles amortize per-step overhead on v5e/v6e; cap on v7x (64 MiB VMEM).
        candidates = (256, 128) if is_v7 else (512, 384, 256, 128)
        tq = 128
        for cand in candidates:
            if HW % cand == 0:
                tq = cand
                break
    assert HW % tq == 0 and tq % 128 == 0, "H*W must split into 128-multiple query tiles"
    n_qt = HW // tq

    # Free reshape NCHW -> channels-first (C, HW); pre-cast to bf16 (only dtype
    # the kernel ever consumes) so x is moved from HBM once, at half the bytes.
    x = x_nchw.reshape(B, Cin, HW).astype(jnp.bfloat16)

    xf_index = lambda b, q: (b, 0, 0)
    if is_v7:
        # Full-image block is only consumed at qt==0; single-buffer it on the
        # 64 MiB-VMEM part.  (Guarded: fall back to default buffering if the
        # installed jax does not accept pipeline_mode.)
        try:
            xf_spec = pl.BlockSpec((1, Cin, HW), xf_index, pipeline_mode=pl.Buffered(1))
        except TypeError:
            xf_spec = pl.BlockSpec((1, Cin, HW), xf_index)
    else:
        xf_spec = pl.BlockSpec((1, Cin, HW), xf_index)

    grid_spec = pltpu.PrefetchScalarGridSpec(
        num_scalar_prefetch=0,
        grid=(B, n_qt),
        in_specs=[
            xf_spec,                                                   # full image (bf16)
            pl.BlockSpec((Cout, Cin), lambda b, q: (0, 0)),            # W_conv
            pl.BlockSpec((Cout, 1), lambda b, q: (0, 0)),              # BN scale (conv)
            pl.BlockSpec((Cout, 1), lambda b, q: (0, 0)),              # BN shift (conv)
            pl.BlockSpec((Cout, Cin), lambda b, q: (0, 0)),            # W_proj
            pl.BlockSpec((Cout, 1), lambda b, q: (0, 0)),              # BN scale (proj)
            pl.BlockSpec((Cout, 1), lambda b, q: (0, 0)),              # BN shift (proj)
            pl.BlockSpec((2 * C8p + Cout, Cout), lambda b, q: (0, 0)),  # [Wq;Wk;gamma*Wv]
            pl.BlockSpec((2 * C8p + Cout, 1), lambda b, q: (0, 0)),    # [bq;bk;gamma*bv]
        ],
        out_specs=pl.BlockSpec((1, Cout, tq), lambda b, q: (b, 0, q)),
        scratch_shapes=[
            pltpu.VMEM((Cout, HW), jnp.bfloat16),                      # xp (proj+BN+ReLU)
            pltpu.VMEM((C8p, HW), jnp.bfloat16),                       # q
            pltpu.VMEM((C8p, HW), jnp.bfloat16),                       # k
            pltpu.VMEM((Cout, HW), jnp.bfloat16),                      # v (gamma folded)
        ],
    )

    out = pl.pallas_call(
        functools.partial(aspp_kernel, use_bf16_exp=use_bf16_exp),
        out_shape=jax.ShapeDtypeStruct((B, Cout, HW), jnp.float32),
        grid_spec=grid_spec,
        compiler_params=pltpu.CompilerParams(
            dimension_semantics=("parallel", "arbitrary"),
            vmem_limit_bytes=_vmem_limit_bytes()),
    )(x,
      fp["w_conv"], fp["s_c"], fp["b_c"],
      fp["w_proj"], fp["s_p"], fp["b_p"],
      fp["w_qkv"], fp["b_qkv"])

    return out.reshape(B, Cout, H, W)       # free reshape back to NCHW


# --------------------------------------------------------------------------- #
# Parameters (PyTorch-structured) and inference-time folding
# --------------------------------------------------------------------------- #
def make_params(key, in_channels, out_channels):
    C8 = out_channels // 8
    ks = jax.random.split(key, 20)
    n = lambda k, shape, s=0.1: jax.random.normal(k, shape, jnp.float32) * s
    u = lambda k, shape: jax.random.uniform(k, shape, jnp.float32, 0.5, 1.5)
    return {
        # self.conv = Conv2d(Cin, Cout, 1, bias=False) + BN + ReLU
        "conv_w": n(ks[0], (out_channels, in_channels)),
        "conv_bn": dict(w=1.0 + n(ks[1], (out_channels,)), b=n(ks[2], (out_channels,)),
                        mean=n(ks[3], (out_channels,)), var=u(ks[4], (out_channels,))),
        # channel_proj = Conv2d(Cin, Cout, 1) + BN + ReLU
        "proj_w": n(ks[5], (out_channels, in_channels)),
        "proj_b": n(ks[6], (out_channels,)),
        "proj_bn": dict(w=1.0 + n(ks[7], (out_channels,)), b=n(ks[8], (out_channels,)),
                        mean=n(ks[9], (out_channels,)), var=u(ks[10], (out_channels,))),
        "q_w": n(ks[11], (C8, out_channels)), "q_b": n(ks[12], (C8,)),
        "k_w": n(ks[13], (C8, out_channels)), "k_b": n(ks[14], (C8,)),
        "v_w": n(ks[15], (out_channels, out_channels)), "v_b": n(ks[16], (out_channels,)),
        # PyTorch init is zeros(1); use a non-zero value so attention is exercised.
        "gamma": jnp.float32(0.5),
    }


def fold_params(p, eps=1e-5):
    """Fold eval-mode BN (running stats + conv bias) and gamma; fuse & pad weights."""
    Cout, _ = p["conv_w"].shape
    C8 = p["q_w"].shape[0]
    C8p = max(16, -(-C8 // 16) * 16)      # pad q/k channels to a bf16 packing multiple

    def bn_fold(bn, conv_bias):
        s = bn["w"] / jnp.sqrt(bn["var"] + eps)
        return s, (conv_bias - bn["mean"]) * s + bn["b"]

    s_c, t_c = bn_fold(p["conv_bn"], 0.0)
    s_p, t_p = bn_fold(p["proj_bn"], p["proj_b"])

    def pad_rows(a, rows):
        return jnp.zeros((rows,) + a.shape[1:], a.dtype).at[: a.shape[0]].set(a)

    g = p["gamma"]
    # [W_q ; W_k ; gamma*W_v] -> one fused matmul per image at qt==0.
    w_qkv = jnp.concatenate([pad_rows(p["q_w"], C8p),
                             pad_rows(p["k_w"], C8p),
                             g * p["v_w"]], axis=0)
    b_qkv = jnp.concatenate([pad_rows(p["q_b"], C8p),
                             pad_rows(p["k_b"], C8p),
                             g * p["v_b"]], axis=0)

    return {
        "w_conv": p["conv_w"].astype(jnp.bfloat16),
        "s_c": s_c.reshape(-1, 1), "b_c": t_c.reshape(-1, 1),
        "w_proj": p["proj_w"].astype(jnp.bfloat16),
        "s_p": s_p.reshape(-1, 1), "b_p": t_p.reshape(-1, 1),
        "w_qkv": w_qkv.astype(jnp.bfloat16),
        "b_qkv": b_qkv.reshape(-1, 1),
    }


# --------------------------------------------------------------------------- #
# References
# --------------------------------------------------------------------------- #
def ref_forward_folded(x_nchw, fp, use_bf16_exp):
    """Mirrors the kernel math (bf16 matmul inputs, f32 accumulation, deferred softmax)."""
    B, Cin, H, W = x_nchw.shape
    HW = H * W
    Cout = fp["w_conv"].shape[0]
    C8p = (fp["w_qkv"].shape[0] - Cout) // 2
    x = x_nchw.reshape(B, Cin, HW).astype(jnp.bfloat16)

    conv = jnp.einsum("oc,bch->boh", fp["w_conv"], x, preferred_element_type=jnp.float32)
    conv = jnp.maximum(conv * fp["s_c"] + fp["b_c"], 0.0)
    xp = jnp.einsum("oc,bch->boh", fp["w_proj"], x, preferred_element_type=jnp.float32)
    xp = jnp.maximum(xp * fp["s_p"] + fp["b_p"], 0.0)
    xp_bf = xp.astype(jnp.bfloat16)

    qkv = jnp.einsum("oc,bch->boh", fp["w_qkv"], xp_bf,
                     preferred_element_type=jnp.float32) + fp["b_qkv"]
    q = qkv[:, :C8p].astype(jnp.bfloat16)
    k = qkv[:, C8p:2 * C8p].astype(jnp.bfloat16)
    v = qkv[:, 2 * C8p:].astype(jnp.bfloat16)

    energy = jnp.einsum("bci,bcj->bij", q, k, preferred_element_type=jnp.float32)
    m = jnp.max(energy, axis=-1, keepdims=True)
    z = energy - m
    p = jnp.exp(z.astype(jnp.bfloat16)) if use_bf16_exp else jnp.exp(z)
    denom = jnp.sum(p, axis=-1, dtype=jnp.float32)                        # (B, HW)
    out_un = jnp.einsum("bcj,bij->bci", v, p.astype(jnp.bfloat16),
                        preferred_element_type=jnp.float32)
    res = conv * xp_bf.astype(jnp.float32) * out_un / denom[:, None, :]   # gamma folded in v
    return res.reshape(B, Cout, H, W)


def ref_forward_f32(x_nchw, p, eps=1e-5):
    """PyTorch-faithful f32 reference from the unfolded parameters."""
    B, Cin, H, W = x_nchw.shape
    HW = H * W
    x = x_nchw.reshape(B, Cin, HW)

    def bn(y, bnp):
        s = bnp["w"] / jnp.sqrt(bnp["var"] + eps)
        return (y - bnp["mean"][:, None]) * s[:, None] + bnp["b"][:, None]

    conv = jnp.maximum(bn(jnp.einsum("oc,bch->boh", p["conv_w"], x), p["conv_bn"]), 0.0)
    xp = jnp.maximum(bn(jnp.einsum("oc,bch->boh", p["proj_w"], x) + p["proj_b"][:, None],
                        p["proj_bn"]), 0.0)
    q = jnp.einsum("oc,bch->boh", p["q_w"], xp) + p["q_b"][:, None]
    k = jnp.einsum("oc,bch->boh", p["k_w"], xp) + p["k_b"][:, None]
    v = jnp.einsum("oc,bch->boh", p["v_w"], xp) + p["v_b"][:, None]
    energy = jnp.einsum("bci,bcj->bij", q, k)
    attn = jax.nn.softmax(energy, axis=-1)
    out = jnp.einsum("bcj,bij->bci", v, attn)
    res = conv * (p["gamma"] * out * xp)
    return res.reshape(B, -1, H, W)


# --------------------------------------------------------------------------- #
if __name__ == "__main__":
    B, Cin, Cout, H, W = 2, 16, 32, 16, 16          # HW = 256
    key = jax.random.PRNGKey(0)
    kx, kp = jax.random.split(key)
    x = jax.random.normal(kx, (B, Cin, H, W), jnp.float32)

    raw = make_params(kp, Cin, Cout)
    fp = fold_params(raw)

    kind = _device_kind()
    use_bf16_exp = ("v6" in kind) or ("v7" in kind)   # bf16 EUP path only on v6e/v7x

    # tq=128 -> two query tiles per image: exercises the tiled-attention path.
    y = aspp_module_forward(x, fp, tq=128, use_bf16_exp=use_bf16_exp)
    y = jax.block_until_ready(y)
    assert y.shape == (B, Cout, H, W)

    y_ref = ref_forward_folded(x, fp, use_bf16_exp)
    y_f32 = ref_forward_f32(x, raw)

    err_tight = float(jnp.max(jnp.abs(y - y_ref)))
    err_loose = float(jnp.max(jnp.abs(y - y_f32)))
    assert jnp.allclose(y, y_ref, atol=5e-3, rtol=3e-2), f"mirrored-ref err {err_tight}"
    assert jnp.allclose(y, y_f32, atol=3e-2, rtol=1.5e-1), f"f32-ref err {err_loose}"

    print("KERNEL_OK")
</pallas_src>

<mosaic_0001>
module attributes {stable_mosaic.version = 11 : i64} {
  func.func @aspp_kernel(%arg0: i32, %arg1: i32, %arg2: memref<1x16x256xbf16, #tpu.memory_space<vmem>>, %arg3: memref<32x16xbf16, #tpu.memory_space<vmem>>, %arg4: memref<32x1xf32, #tpu.memory_space<vmem>>, %arg5: memref<32x1xf32, #tpu.memory_space<vmem>>, %arg6: memref<32x16xbf16, #tpu.memory_space<vmem>>, %arg7: memref<32x1xf32, #tpu.memory_space<vmem>>, %arg8: memref<32x1xf32, #tpu.memory_space<vmem>>, %arg9: memref<64x32xbf16, #tpu.memory_space<vmem>>, %arg10: memref<64x1xf32, #tpu.memory_space<vmem>>, %arg11: memref<1x32x128xf32, #tpu.memory_space<vmem>>, %arg12: memref<32x256xbf16, #tpu.memory_space<vmem>>, %arg13: memref<16x256xbf16, #tpu.memory_space<vmem>>, %arg14: memref<16x256xbf16, #tpu.memory_space<vmem>>, %arg15: memref<32x256xbf16, #tpu.memory_space<vmem>>) attributes {dimension_semantics = [#tpu.dimension_semantics<parallel>, #tpu.dimension_semantics<arbitrary>], iteration_bounds = array<i64: 2, 2>, scalar_prefetch = 0 : i64, scratch_operands = 4 : i64, tpu.core_type = #tpu.core_type<tc>, window_params = [{transform_indices = @transform_0, window_bounds = array<i64: 1, 16, 256>}, {pipeline_mode = #tpu.pipeline_mode<synchronous>, transform_indices = @transform_1, window_bounds = array<i64: 32, 16>}, {pipeline_mode = #tpu.pipeline_mode<synchronous>, transform_indices = @transform_2, window_bounds = array<i64: 32, 1>}, {pipeline_mode = #tpu.pipeline_mode<synchronous>, transform_indices = @transform_3, window_bounds = array<i64: 32, 1>}, {pipeline_mode = #tpu.pipeline_mode<synchronous>, transform_indices = @transform_4, window_bounds = array<i64: 32, 16>}, {pipeline_mode = #tpu.pipeline_mode<synchronous>, transform_indices = @transform_5, window_bounds = array<i64: 32, 1>}, {pipeline_mode = #tpu.pipeline_mode<synchronous>, transform_indices = @transform_6, window_bounds = array<i64: 32, 1>}, {pipeline_mode = #tpu.pipeline_mode<synchronous>, transform_indices = @transform_7, window_bounds = array<i64: 64, 32>}, {pipeline_mode = #tpu.pipeline_mode<synchronous>, transform_indices = @transform_8, window_bounds = array<i64: 64, 1>}, {transform_indices = @transform_9, window_bounds = array<i64: 1, 32, 128>}]} {
    %c0_i32 = arith.constant 0 : i32
    %0 = arith.cmpi eq, %arg1, %c0_i32 : i32
    %1 = arith.extui %0 : i1 to i32
    %c0_i32_0 = arith.constant 0 : i32
    %2 = arith.cmpi ne, %1, %c0_i32_0 : i32
    scf.if %2 {
      %c0_22 = arith.constant 0 : index
      %c0_23 = arith.constant 0 : index
      %c0_24 = arith.constant 0 : index
      %43 = vector.load %arg2[%c0_22, %c0_23, %c0_24] : memref<1x16x256xbf16, #tpu.memory_space<vmem>>, vector<1x16x256xbf16>
      %44 = vector.shape_cast %43 : vector<1x16x256xbf16> to vector<16x256xbf16>
      %c0_25 = arith.constant 0 : index
      %c0_26 = arith.constant 0 : index
      %45 = vector.load %arg6[%c0_25, %c0_26] : memref<32x16xbf16, #tpu.memory_space<vmem>>, vector<32x16xbf16>
      %cst_27 = arith.constant dense<0.000000e+00> : vector<32x256xf32>
      %46 = tpu.matmul %45, %44, %cst_27 {dimension_numbers = #tpu.dot_dimension_numbers<[1], [0], [0], [1], [0, 0, 1, 1], [], []>} : vector<32x16xbf16>, vector<16x256xbf16>, vector<32x256xf32> -> vector<32x256xf32>
      %c0_28 = arith.constant 0 : index
      %c0_29 = arith.constant 0 : index
      %47 = vector.load %arg7[%c0_28, %c0_29] : memref<32x1xf32, #tpu.memory_space<vmem>>, vector<32x1xf32>
      %48 = vector.broadcast %47 : vector<32x1xf32> to vector<32x256xf32>
      %49 = arith.mulf %46, %48 : vector<32x256xf32>
      %c0_30 = arith.constant 0 : index
      %c0_31 = arith.constant 0 : index
      %50 = vector.load %arg8[%c0_30, %c0_31] : memref<32x1xf32, #tpu.memory_space<vmem>>, vector<32x1xf32>
      %51 = vector.broadcast %50 : vector<32x1xf32> to vector<32x256xf32>
      %52 = arith.addf %49, %51 : vector<32x256xf32>
      %cst_32 = arith.constant 0.000000e+00 : f32
      %53 = vector.broadcast %cst_32 : f32 to vector<32x256xf32>
      %54 = arith.maximumf %52, %53 : vector<32x256xf32>
      %55 = arith.truncf %54 : vector<32x256xf32> to vector<32x256xbf16>
      %c0_33 = arith.constant 0 : index
      %c0_34 = arith.constant 0 : index
      %56 = vector.load %arg12[%c0_33, %c0_34] : memref<32x256xbf16, #tpu.memory_space<vmem>>, vector<32x256xbf16>
      tpu.vector_store %arg12[%c0_33, %c0_34], %55 {strides = array<i32>} : memref<32x256xbf16, #tpu.memory_space<vmem>>, vector<32x256xbf16>,
      %c0_35 = arith.constant 0 : index
      %c0_36 = arith.constant 0 : index
      %57 = vector.load %arg9[%c0_35, %c0_36] : memref<64x32xbf16, #tpu.memory_space<vmem>>, vector<64x32xbf16>
      %cst_37 = arith.constant dense<0.000000e+00> : vector<64x256xf32>
      %58 = tpu.matmul %57, %55, %cst_37 {dimension_numbers = #tpu.dot_dimension_numbers<[1], [0], [0], [1], [0, 0, 1, 1], [], []>} : vector<64x32xbf16>, vector<32x256xbf16>, vector<64x256xf32> -> vector<64x256xf32>
      %c0_38 = arith.constant 0 : index
      %c0_39 = arith.constant 0 : index
      %59 = vector.load %arg10[%c0_38, %c0_39] : memref<64x1xf32, #tpu.memory_space<vmem>>, vector<64x1xf32>
      %60 = vector.broadcast %59 : vector<64x1xf32> to vector<64x256xf32>
      %61 = arith.addf %58, %60 : vector<64x256xf32>
      %62 = vector.extract_strided_slice %61 {offsets = [0, 0], sizes = [16, 256], strides = [1, 1]} : vector<64x256xf32> to vector<16x256xf32>
      %63 = arith.truncf %62 : vector<16x256xf32> to vector<16x256xbf16>
      %c0_40 = arith.constant 0 : index
      %c0_41 = arith.constant 0 : index
      %64 = vector.load %arg13[%c0_40, %c0_41] : memref<16x256xbf16, #tpu.memory_space<vmem>>, vector<16x256xbf16>
      tpu.vector_store %arg13[%c0_40, %c0_41], %63 {strides = array<i32>} : memref<16x256xbf16, #tpu.memory_space<vmem>>, vector<16x256xbf16>,
      %65 = vector.extract_strided_slice %61 {offsets = [16, 0], sizes = [16, 256], strides = [1, 1]} : vector<64x256xf32> to vector<16x256xf32>
      %66 = arith.truncf %65 : vector<16x256xf32> to vector<16x256xbf16>
      %c0_42 = arith.constant 0 : index
      %c0_43 = arith.constant 0 : index
      %67 = vector.load %arg14[%c0_42, %c0_43] : memref<16x256xbf16, #tpu.memory_space<vmem>>, vector<16x256xbf16>
      tpu.vector_store %arg14[%c0_42, %c0_43], %66 {strides = array<i32>} : memref<16x256xbf16, #tpu.memory_space<vmem>>, vector<16x256xbf16>,
      %68 = vector.extract_strided_slice %61 {offsets = [32, 0], sizes = [32, 256], strides = [1, 1]} : vector<64x256xf32> to vector<32x256xf32>
      %69 = arith.truncf %68 : vector<32x256xf32> to vector<32x256xbf16>
      %c0_44 = arith.constant 0 : index
      %c0_45 = arith.constant 0 : index
      %70 = vector.load %arg15[%c0_44, %c0_45] : memref<32x256xbf16, #tpu.memory_space<vmem>>, vector<32x256xbf16>
      tpu.vector_store %arg15[%c0_44, %c0_45], %69 {strides = array<i32>} : memref<32x256xbf16, #tpu.memory_space<vmem>>, vector<32x256xbf16>,
    } else {
    }
    %c128_i32 = arith.constant 128 : i32
    %3 = arith.muli %arg1, %c128_i32 : i32
    %4 = tpu.assume_multiple %3, 128 : i32
    %c0 = arith.constant 0 : index
    %c0_1 = arith.constant 0 : index
    %5 = arith.index_cast %4 : i32 to index
    %6 = vector.load %arg2[%c0, %c0_1, %5] : memref<1x16x256xbf16, #tpu.memory_space<vmem>>, vector<1x16x128xbf16>
    %7 = vector.shape_cast %6 : vector<1x16x128xbf16> to vector<16x128xbf16>
    %c0_2 = arith.constant 0 : index
    %c0_3 = arith.constant 0 : index
    %8 = vector.load %arg3[%c0_2, %c0_3] : memref<32x16xbf16, #tpu.memory_space<vmem>>, vector<32x16xbf16>
    %cst = arith.constant dense<0.000000e+00> : vector<32x128xf32>
    %9 = tpu.matmul %8, %7, %cst {dimension_numbers = #tpu.dot_dimension_numbers<[1], [0], [0], [1], [0, 0, 1, 1], [], []>} : vector<32x16xbf16>, vector<16x128xbf16>, vector<32x128xf32> -> vector<32x128xf32>
    %c0_4 = arith.constant 0 : index
    %c0_5 = arith.constant 0 : index
    %10 = vector.load %arg4[%c0_4, %c0_5] : memref<32x1xf32, #tpu.memory_space<vmem>>, vector<32x1xf32>
    %11 = vector.broadcast %10 : vector<32x1xf32> to vector<32x128xf32>
    %12 = arith.mulf %9, %11 : vector<32x128xf32>
    %c0_6 = arith.constant 0 : index
    %c0_7 = arith.constant 0 : index
    %13 = vector.load %arg5[%c0_6, %c0_7] : memref<32x1xf32, #tpu.memory_space<vmem>>, vector<32x1xf32>
    %14 = vector.broadcast %13 : vector<32x1xf32> to vector<32x128xf32>
    %15 = arith.addf %12, %14 : vector<32x128xf32>
    %cst_8 = arith.constant 0.000000e+00 : f32
    %16 = vector.broadcast %cst_8 : f32 to vector<32x128xf32>
    %17 = arith.maximumf %15, %16 : vector<32x128xf32>
    %c0_9 = arith.constant 0 : index
    %18 = arith.index_cast %4 : i32 to index
    %19 = vector.load %arg12[%c0_9, %18] : memref<32x256xbf16, #tpu.memory_space<vmem>>, vector<32x128xbf16>
    %c0_10 = arith.constant 0 : index
    %20 = arith.index_cast %4 : i32 to index
    %21 = vector.load %arg13[%c0_10, %20] : memref<16x256xbf16, #tpu.memory_space<vmem>>, vector<16x128xbf16>
    %c0_11 = arith.constant 0 : index
    %c0_12 = arith.constant 0 : index
    %22 = vector.load %arg14[%c0_11, %c0_12] : memref<16x256xbf16, #tpu.memory_space<vmem>>, vector<16x256xbf16>
    %cst_13 = arith.constant dense<0.000000e+00> : vector<128x256xf32>
    %23 = tpu.matmul %21, %22, %cst_13 {dimension_numbers = #tpu.dot_dimension_numbers<[0], [0], [1], [1], [0, 1, 1, 1], [], []>} : vector<16x128xbf16>, vector<16x256xbf16>, vector<128x256xf32> -> vector<128x256xf32>
    %cst_14 = arith.constant dense<0xFF800000> : vector<128xf32>
    %24 = vector.multi_reduction <maximumf>, %23, %cst_14 [1] : vector<128x256xf32> to vector<128xf32>
    %25 = vector.shape_cast %24 : vector<128xf32> to vector<128x1xf32>
    %26 = vector.broadcast %25 : vector<128x1xf32> to vector<128x256xf32>
    %27 = arith.subf %23, %26 : vector<128x256xf32>
    %28 = math.exp %27 : vector<128x256xf32>
    %cst_15 = arith.constant dense<0.000000e+00> : vector<128xf32>
    %29 = vector.multi_reduction <add>, %28, %cst_15 [1] : vector<128x256xf32> to vector<128xf32>
    %30 = tpu.reciprocal %29 {approx = true} : vector<128xf32> -> vector<128xf32>
    %31 = arith.truncf %28 : vector<128x256xf32> to vector<128x256xbf16>
    %c0_16 = arith.constant 0 : index
    %c0_17 = arith.constant 0 : index
    %32 = vector.load %arg15[%c0_16, %c0_17] : memref<32x256xbf16, #tpu.memory_space<vmem>>, vector<32x256xbf16>
    %cst_18 = arith.constant dense<0.000000e+00> : vector<32x128xf32>
    %33 = tpu.matmul %32, %31, %cst_18 {dimension_numbers = #tpu.dot_dimension_numbers<[1], [1], [0], [0], [0, 0, 1, 0], [], []>} : vector<32x256xbf16>, vector<128x256xbf16>, vector<32x128xf32> -> vector<32x128xf32>
    %34 = arith.extf %19 : vector<32x128xbf16> to vector<32x128xf32>
    %35 = arith.mulf %17, %34 : vector<32x128xf32>
    %36 = arith.mulf %35, %33 : vector<32x128xf32>
    %37 = vector.shape_cast %30 : vector<128xf32> to vector<1x128xf32>
    %38 = vector.broadcast %37 : vector<1x128xf32> to vector<32x128xf32>
    %39 = arith.mulf %36, %38 : vector<32x128xf32>
    %c0_19 = arith.constant 0 : index
    %c0_20 = arith.constant 0 : index
    %c0_21 = arith.constant 0 : index
    %40 = vector.load %arg11[%c0_19, %c0_20, %c0_21] : memref<1x32x128xf32, #tpu.memory_space<vmem>>, vector<1x32x128xf32>
    %41 = vector.shape_cast %40 : vector<1x32x128xf32> to vector<32x128xf32>
    %42 = vector.shape_cast %39 : vector<32x128xf32> to vector<1x32x128xf32>
    tpu.vector_store %arg11[%c0_19, %c0_20, %c0_21], %42 {strides = array<i32>} : memref<1x32x128xf32, #tpu.memory_space<vmem>>, vector<1x32x128xf32>,
    return
  }
  func.func @transform_0(%arg0: i32, %arg1: i32) -> (i32, i32, i32) {
    %c0_i32 = arith.constant 0 : i32
    %c0_i32_0 = arith.constant 0 : i32
    %c0_i32_1 = arith.constant 0 : i32
    return %arg0, %c0_i32, %c0_i32_0 : i32, i32, i32
  }
  func.func @transform_1(%arg0: i32, %arg1: i32) -> (i32, i32) {
    %c0_i32 = arith.constant 0 : i32
    %c0_i32_0 = arith.constant 0 : i32
    %c0_i32_1 = arith.constant 0 : i32
    return %c0_i32, %c0_i32_0 : i32, i32
  }
  func.func @transform_2(%arg0: i32, %arg1: i32) -> (i32, i32) {
    %c0_i32 = arith.constant 0 : i32
    %c0_i32_0 = arith.constant 0 : i32
    %c0_i32_1 = arith.constant 0 : i32
    return %c0_i32, %c0_i32_0 : i32, i32
  }
  func.func @transform_3(%arg0: i32, %arg1: i32) -> (i32, i32) {
    %c0_i32 = arith.constant 0 : i32
    %c0_i32_0 = arith.constant 0 : i32
    %c0_i32_1 = arith.constant 0 : i32
    return %c0_i32, %c0_i32_0 : i32, i32
  }
  func.func @transform_4(%arg0: i32, %arg1: i32) -> (i32, i32) {
    %c0_i32 = arith.constant 0 : i32
    %c0_i32_0 = arith.constant 0 : i32
    %c0_i32_1 = arith.constant 0 : i32
    return %c0_i32, %c0_i32_0 : i32, i32
  }
  func.func @transform_5(%arg0: i32, %arg1: i32) -> (i32, i32) {
    %c0_i32 = arith.constant 0 : i32
    %c0_i32_0 = arith.constant 0 : i32
    %c0_i32_1 = arith.constant 0 : i32
    return %c0_i32, %c0_i32_0 : i32, i32
  }
  func.func @transform_6(%arg0: i32, %arg1: i32) -> (i32, i32) {
    %c0_i32 = arith.constant 0 : i32
    %c0_i32_0 = arith.constant 0 : i32
    %c0_i32_1 = arith.constant 0 : i32
    return %c0_i32, %c0_i32_0 : i32, i32
  }
  func.func @transform_7(%arg0: i32, %arg1: i32) -> (i32, i32) {
    %c0_i32 = arith.constant 0 : i32
    %c0_i32_0 = arith.constant 0 : i32
    %c0_i32_1 = arith.constant 0 : i32
    return %c0_i32, %c0_i32_0 : i32, i32
  }
  func.func @transform_8(%arg0: i32, %arg1: i32) -> (i32, i32) {
    %c0_i32 = arith.constant 0 : i32
    %c0_i32_0 = arith.constant 0 : i32
    %c0_i32_1 = arith.constant 0 : i32
    return %c0_i32, %c0_i32_0 : i32, i32
  }
  func.func @transform_9(%arg0: i32, %arg1: i32) -> (i32, i32, i32) {
    %c0_i32 = arith.constant 0 : i32
    %c0_i32_0 = arith.constant 0 : i32
    return %arg0, %c0_i32, %arg1 : i32, i32, i32
  }
}

</mosaic_0001>

<llo_original>
// kernel: tpu_custom_call.1
$region0: #{tpu_custom_call.1}
  #allocation0 [shape = 'u32[]', space=smem, size = 0x4, offset = 0x4, fixed_abs, tag = 'smem constant byte address 0x4 - core index']
  #allocation1 [shape = 'u32[144,128]{1,0:T(1,128)}', space=vmem, size = 0x12000, scoped, tag = 'internal scratch']
  #allocation2 [shape = 'bf16[32,256]{1,0:T(16,128)(2,1)}', space=vmem, size = 0x4000, scoped, tag = 'scratch operand']
  #allocation3 [shape = 'bf16[16,256]{1,0:T(16,128)(2,1)}', space=vmem, size = 0x2000, scoped, tag = 'scratch operand']
  #allocation4 [shape = 'bf16[16,256]{1,0:T(16,128)(2,1)}', space=vmem, size = 0x2000, scoped, tag = 'scratch operand']
  #allocation5 [shape = 'bf16[32,256]{1,0:T(16,128)(2,1)}', space=vmem, size = 0x4000, scoped, tag = 'scratch operand']
  %s0 = inlined_call_operand.vmem [shape: bf16[2,16,256], index: 0, kind: input, shape index: {}]
  %s1 = inlined_call_operand.vmem [shape: bf16[32,16], index: 1, kind: input, shape index: {}]
  %s2 = inlined_call_operand.vmem [shape: f32[32,1], index: 2, kind: input, shape index: {}]
  %s3 = inlined_call_operand.vmem [shape: f32[32,1], index: 3, kind: input, shape index: {}]
  %s4 = inlined_call_operand.vmem [shape: bf16[32,16], index: 4, kind: input, shape index: {}]
  %s5 = inlined_call_operand.vmem [shape: f32[32,1], index: 5, kind: input, shape index: {}]
  %s6 = inlined_call_operand.vmem [shape: f32[32,1], index: 6, kind: input, shape index: {}]
  %s7 = inlined_call_operand.vmem [shape: bf16[64,32], index: 7, kind: input, shape index: {}]
  %s8 = inlined_call_operand.vmem [shape: f32[64,1], index: 8, kind: input, shape index: {}]
  %s9 = inlined_call_operand.hbm [shape: f32[2,32,256], index: 9, kind: output, shape index: {}]
  %s10 = sld [smem:[#allocation0]]
  $region73: #{tpu_custom_call.1} parent=0
    _
  %s12 = ssub.s32 1, %s10
  %s13 = scalar_select 0, %s12, %s10
  $region1: #{tpu_custom_call.1} parent=0
    #allocation6 [shape = 'u8[32768]{0}', space=vmem, size = 0x8000, scoped, tag = 'output window, operand 0']
    #allocation7 [shape = 's32[2]{0}', space=sflag, size = 0x8, scoped, tag = 'scoped memory for tpu_custom_call.1']
    %14 = vsyncpa [#allocation7], 0
    %s15 = scalar_lea.sflag [#allocation7], 1
    %16 = vsyncpa %s15, 0
    loop: start=0, step=1, limit=6
    $region2: #{tpu_custom_call.1} parent=1 // loop_pre_header
      _
    $region3: #{tpu_custom_call.1} parent=1 // loop_header
      %s18 = sphi 0, %s22
      %p19 = scmp.ge.s32.totalorder %s18, 6
      %s25 = sphi 0, %s37
      %s26 = sphi 0, %s33
      %s27 = sphi 0, %s25
      %s28 = sphi 0, %s26
      %s29 = sphi 0, %s27
      %s30 = sphi 0, %s28
      %s40 = sphi 0, %s42
      %s43 = sphi 0, %s40
      %s44 = sphi 0, %s43
      %s60 = sphi 0, %s44
      %s64 = sphi 0, %s64
      %s66 = sphi 0, %s64
      %s67 = sphi 0, %s66
      %s81 = sphi 0, %s67
      %s85 = sphi 0, %s85
      %s87 = sphi 0, %s85
      %s88 = sphi 0, %s87
      %s102 = sphi 0, %s88
      %s106 = sphi 0, %s106
      %s108 = sphi 0, %s106
      %s109 = sphi 0, %s108
      %s123 = sphi 0, %s109
      %s127 = sphi 0, %s127
      %s129 = sphi 0, %s127
      %s130 = sphi 0, %s129
      %s144 = sphi 0, %s130
      %s148 = sphi 0, %s148
      %s150 = sphi 0, %s148
      %s151 = sphi 0, %s150
      %s165 = sphi 0, %s151
      %s169 = sphi 0, %s169
      %s171 = sphi 0, %s169
      %s172 = sphi 0, %s171
      %s186 = sphi 0, %s172
      %s190 = sphi 0, %s190
      %s192 = sphi 0, %s190
      %s193 = sphi 0, %s192
      %s207 = sphi 0, %s193
      %s211 = sphi 0, %s211
      %s213 = sphi 0, %s211
      %s214 = sphi 0, %s213
      %s228 = sphi 0, %s214
      %s236 = sphi 0, %s238
      %s239 = sphi 0, %s236
      %s240 = sphi 0, %s239
      %s256 = sphi 0, %s240
    $region4: #{tpu_custom_call.1} parent=1 // loop_header_branch
      %21 = sbr.rel (%p19) target = $region8
    $region5: #{tpu_custom_call.1} parent=1 // loop_body
      %s23 = ssub.s32 %s18, 1
      %s24 = ssub.s32 %s18, 2
      %s31 = sadd.s32 1, %s26
      %p32 = scmp.ge.s32.totalorder %s31, 2
      %s33 = scalar_select %p32, 0, %s31
      %s34 = sadd.s32 1, %s25
      %s35 = scalar_select %p32, %s34, %s25
      %p36 = scmp.ge.s32.totalorder %s35, 2
      %s37 = scalar_select %p36, 0, %s35
      %s38 = ssub.s32 %s25, %s37
      %p39 = scmp.eq.s32.totalorder %s38, 0
      %s41 = sadd.s32 %s40, 1
      %s42 = scalar_select %p39, %s40, %s41
      %p45 = pneg %p39
      %p46 = scmp.eq.s32.totalorder %s18, 3
      %p47 = por %p45, %p46
      %p48 = scmp.ne.s32.totalorder %s40, %s43
      %p49 = scmp.eq.s32.totalorder %s18, 0
      %p50 = por %p48, %p49
      %p51 = scmp.ne.s32.totalorder %s40, %s43
      %p52 = scmp.eq.s32.totalorder %s23, 3
      %p53 = por %p51, %p52
      %p54 = scmp.ne.s32.totalorder %s43, %s44
      %p55 = scmp.eq.s32.totalorder %s23, 0
      %p56 = por %p54, %p55
      %p57 = scmp.ne.s32.totalorder %s43, %s44
      %p58 = scmp.eq.s32.totalorder %s24, 3
      %p59 = por %p57, %p58
      %p61 = scmp.ne.s32.totalorder %s44, %s60
      %p62 = scmp.eq.s32.totalorder %s24, 0
      %p63 = por %p61, %p62
      %s65 = sadd.s32 %s64, 1
      %p68 = scmp.eq.s32.totalorder %s18, 3
      %p69 = scmp.ne.s32.totalorder %s64, %s66
      %p70 = scmp.eq.s32.totalorder %s18, 0
      %p71 = por %p69, %p70
      %p72 = scmp.ne.s32.totalorder %s64, %s66
      %p73 = scmp.eq.s32.totalorder %s23, 3
      %p74 = por %p72, %p73
      %p75 = scmp.ne.s32.totalorder %s66, %s67
      %p76 = scmp.eq.s32.totalorder %s23, 0
      %p77 = por %p75, %p76
      %p78 = scmp.ne.s32.totalorder %s66, %s67
      %p79 = scmp.eq.s32.totalorder %s24, 3
      %p80 = por %p78, %p79
      %p82 = scmp.ne.s32.totalorder %s67, %s81
      %p83 = scmp.eq.s32.totalorder %s24, 0
      %p84 = por %p82, %p83
      %s86 = sadd.s32 %s85, 1
      %p89 = scmp.eq.s32.totalorder %s18, 3
      %p90 = scmp.ne.s32.totalorder %s85, %s87
      %p91 = scmp.eq.s32.totalorder %s18, 0
      %p92 = por %p90, %p91
      %p93 = scmp.ne.s32.totalorder %s85, %s87
      %p94 = scmp.eq.s32.totalorder %s23, 3
      %p95 = por %p93, %p94
      %p96 = scmp.ne.s32.totalorder %s87, %s88
      %p97 = scmp.eq.s32.totalorder %s23, 0
      %p98 = por %p96, %p97
      %p99 = scmp.ne.s32.totalorder %s87, %s88
      %p100 = scmp.eq.s32.totalorder %s24, 3
      %p101 = por %p99, %p100
      %p103 = scmp.ne.s32.totalorder %s88, %s102
      %p104 = scmp.eq.s32.totalorder %s24, 0
      %p105 = por %p103, %p104
      %s107 = sadd.s32 %s106, 1
      %p110 = scmp.eq.s32.totalorder %s18, 3
      %p111 = scmp.ne.s32.totalorder %s106, %s108
      %p112 = scmp.eq.s32.totalorder %s18, 0
      %p113 = por %p111, %p112
      %p114 = scmp.ne.s32.totalorder %s106, %s108
      %p115 = scmp.eq.s32.totalorder %s23, 3
      %p116 = por %p114, %p115
      %p117 = scmp.ne.s32.totalorder %s108, %s109
      %p118 = scmp.eq.s32.totalorder %s23, 0
      %p119 = por %p117, %p118
      %p120 = scmp.ne.s32.totalorder %s108, %s109
      %p121 = scmp.eq.s32.totalorder %s24, 3
      %p122 = por %p120, %p121
      %p124 = scmp.ne.s32.totalorder %s109, %s123
      %p125 = scmp.eq.s32.totalorder %s24, 0
      %p126 = por %p124, %p125
      %s128 = sadd.s32 %s127, 1
      %p131 = scmp.eq.s32.totalorder %s18, 3
      %p132 = scmp.ne.s32.totalorder %s127, %s129
      %p133 = scmp.eq.s32.totalorder %s18, 0
      %p134 = por %p132, %p133
      %p135 = scmp.ne.s32.totalorder %s127, %s129
      %p136 = scmp.eq.s32.totalorder %s23, 3
      %p137 = por %p135, %p136
      %p138 = scmp.ne.s32.totalorder %s129, %s130
      %p139 = scmp.eq.s32.totalorder %s23, 0
      %p140 = por %p138, %p139
      %p141 = scmp.ne.s32.totalorder %s129, %s130
      %p142 = scmp.eq.s32.totalorder %s24, 3
      %p143 = por %p141, %p142
      %p145 = scmp.ne.s32.totalorder %s130, %s144
      %p146 = scmp.eq.s32.totalorder %s24, 0
      %p147 = por %p145, %p146
      %s149 = sadd.s32 %s148, 1
      %p152 = scmp.eq.s32.totalorder %s18, 3
      %p153 = scmp.ne.s32.totalorder %s148, %s150
      %p154 = scmp.eq.s32.totalorder %s18, 0
      %p155 = por %p153, %p154
      %p156 = scmp.ne.s32.totalorder %s148, %s150
      %p157 = scmp.eq.s32.totalorder %s23, 3
      %p158 = por %p156, %p157
      %p159 = scmp.ne.s32.totalorder %s150, %s151
      %p160 = scmp.eq.s32.totalorder %s23, 0
      %p161 = por %p159, %p160
      %p162 = scmp.ne.s32.totalorder %s150, %s151
      %p163 = scmp.eq.s32.totalorder %s24, 3
      %p164 = por %p162, %p163
      %p166 = scmp.ne.s32.totalorder %s151, %s165
      %p167 = scmp.eq.s32.totalorder %s24, 0
      %p168 = por %p166, %p167
      %s170 = sadd.s32 %s169, 1
      %p173 = scmp.eq.s32.totalorder %s18, 3
      %p174 = scmp.ne.s32.totalorder %s169, %s171
      %p175 = scmp.eq.s32.totalorder %s18, 0
      %p176 = por %p174, %p175
      %p177 = scmp.ne.s32.totalorder %s169, %s171
      %p178 = scmp.eq.s32.totalorder %s23, 3
      %p179 = por %p177, %p178
      %p180 = scmp.ne.s32.totalorder %s171, %s172
      %p181 = scmp.eq.s32.totalorder %s23, 0
      %p182 = por %p180, %p181
      %p183 = scmp.ne.s32.totalorder %s171, %s172
      %p184 = scmp.eq.s32.totalorder %s24, 3
      %p185 = por %p183, %p184
      %p187 = scmp.ne.s32.totalorder %s172, %s186
      %p188 = scmp.eq.s32.totalorder %s24, 0
      %p189 = por %p187, %p188
      %s191 = sadd.s32 %s190, 1
      %p194 = scmp.eq.s32.totalorder %s18, 3
      %p195 = scmp.ne.s32.totalorder %s190, %s192
      %p196 = scmp.eq.s32.totalorder %s18, 0
      %p197 = por %p195, %p196
      %p198 = scmp.ne.s32.totalorder %s190, %s192
      %p199 = scmp.eq.s32.totalorder %s23, 3
      %p200 = por %p198, %p199
      %p201 = scmp.ne.s32.totalorder %s192, %s193
      %p202 = scmp.eq.s32.totalorder %s23, 0
      %p203 = por %p201, %p202
      %p204 = scmp.ne.s32.totalorder %s192, %s193
      %p205 = scmp.eq.s32.totalorder %s24, 3
      %p206 = por %p204, %p205
      %p208 = scmp.ne.s32.totalorder %s193, %s207
      %p209 = scmp.eq.s32.totalorder %s24, 0
      %p210 = por %p208, %p209
      %s212 = sadd.s32 %s211, 1
      %p215 = scmp.eq.s32.totalorder %s18, 3
      %p216 = scmp.ne.s32.totalorder %s211, %s213
      %p217 = scmp.eq.s32.totalorder %s18, 0
      %p218 = por %p216, %p217
      %p219 = scmp.ne.s32.totalorder %s211, %s213
      %p220 = scmp.eq.s32.totalorder %s23, 3
      %p221 = por %p219, %p220
      %p222 = scmp.ne.s32.totalorder %s213, %s214
      %p223 = scmp.eq.s32.totalorder %s23, 0
      %p224 = por %p222, %p223
      %p225 = scmp.ne.s32.totalorder %s213, %s214
      %p226 = scmp.eq.s32.totalorder %s24, 3
      %p227 = por %p225, %p226
      %p229 = scmp.ne.s32.totalorder %s214, %s228
      %p230 = scmp.eq.s32.totalorder %s24, 0
      %p231 = por %p229, %p230
      %s232 = ssub.s32 %s25, %s37
      %s233 = ssub.s32 %s26, %s33
      %s234 = sor.u32 %s232, %s233
      %p235 = scmp.eq.s32.totalorder %s234, 0
      %s237 = sadd.s32 %s236, 1
      %s238 = scalar_select %p235, %s236, %s237
      %p241 = pneg %p235
      %p242 = scmp.eq.s32.totalorder %s18, 3
      %p243 = por %p241, %p242
      %p244 = scmp.ne.s32.totalorder %s236, %s239
      %p245 = scmp.eq.s32.totalorder %s18, 0
      %p246 = por %p244, %p245
      %p247 = scmp.ne.s32.totalorder %s236, %s239
      %p248 = scmp.eq.s32.totalorder %s23, 3
      %p249 = por %p247, %p248
      %p250 = scmp.ne.s32.totalorder %s239, %s240
      %p251 = scmp.eq.s32.totalorder %s23, 0
      %p252 = por %p250, %p251
      %p253 = scmp.ne.s32.totalorder %s239, %s240
      %p254 = scmp.eq.s32.totalorder %s24, 3
      %p255 = por %p253, %p254
      %p257 = scmp.ne.s32.totalorder %s240, %s256
      %p258 = scmp.eq.s32.totalorder %s24, 0
      %p259 = por %p257, %p258
      %p260 = scmp.le.s32.totalorder 1, %s18
      %p261 = scmp.lt.s32.totalorder %s18, 5
      %p262 = pnand %p260, %p261
      %p263 = pneg %p262
      // Predicated region
      $region9: #{tpu_custom_call.1} parent=5 // pred_check
        _
      $region10: #{tpu_custom_call.1} parent=5 // pred_check_branch
        %265 = sbr.rel (%p262) target = $region12
      $region11: #{tpu_custom_call.1} parent=5 // pred_region
        %s266 = ssub.s32 %s18, 1
        // Predicated region
        $region13: #{tpu_custom_call.1} parent=11 // pred_check
          %p267 = pneg %p77
        $region14: #{tpu_custom_call.1} parent=11 // pred_check_branch
          %269 = sbr.rel (%p267) target = $region16
        $region15: #{tpu_custom_call.1} parent=11 // pred_region
          _
        $region16: #{tpu_custom_call.1} parent=11 // pred_fallthru
          _
        // Predicated region
        $region17: #{tpu_custom_call.1} parent=11 // pred_check
          %p270 = pneg %p98
        $region18: #{tpu_custom_call.1} parent=11 // pred_check_branch
          %272 = sbr.rel (%p270) target = $region20
        $region19: #{tpu_custom_call.1} parent=11 // pred_region
          _
        $region20: #{tpu_custom_call.1} parent=11 // pred_fallthru
          _
        // Predicated region
        $region21: #{tpu_custom_call.1} parent=11 // pred_check
          %p273 = pneg %p119
        $region22: #{tpu_custom_call.1} parent=11 // pred_check_branch
          %275 = sbr.rel (%p273) target = $region24
        $region23: #{tpu_custom_call.1} parent=11 // pred_region
          _
        $region24: #{tpu_custom_call.1} parent=11 // pred_fallthru
          _
        // Predicated region
        $region25: #{tpu_custom_call.1} parent=11 // pred_check
          %p276 = pneg %p140
        $region26: #{tpu_custom_call.1} parent=11 // pred_check_branch
          %278 = sbr.rel (%p276) target = $region28
        $region27: #{tpu_custom_call.1} parent=11 // pred_region
          _
        $region28: #{tpu_custom_call.1} parent=11 // pred_fallthru
          _
        // Predicated region
        $region29: #{tpu_custom_call.1} parent=11 // pred_check
          %p279 = pneg %p161
        $region30: #{tpu_custom_call.1} parent=11 // pred_check_branch
          %281 = sbr.rel (%p279) target = $region32
        $region31: #{tpu_custom_call.1} parent=11 // pred_region
          _
        $region32: #{tpu_custom_call.1} parent=11 // pred_fallthru
          _
        // Predicated region
        $region33: #{tpu_custom_call.1} parent=11 // pred_check
          %p282 = pneg %p182
        $region34: #{tpu_custom_call.1} parent=11 // pred_check_branch
          %284 = sbr.rel (%p282) target = $region36
        $region35: #{tpu_custom_call.1} parent=11 // pred_region
          _
        $region36: #{tpu_custom_call.1} parent=11 // pred_fallthru
          _
        // Predicated region
        $region37: #{tpu_custom_call.1} parent=11 // pred_check
          %p285 = pneg %p203
        $region38: #{tpu_custom_call.1} parent=11 // pred_check_branch
          %287 = sbr.rel (%p285) target = $region40
        $region39: #{tpu_custom_call.1} parent=11 // pred_region
          _
        $region40: #{tpu_custom_call.1} parent=11 // pred_fallthru
          _
        // Predicated region
        $region41: #{tpu_custom_call.1} parent=11 // pred_check
          %p288 = pneg %p224
        $region42: #{tpu_custom_call.1} parent=11 // pred_check_branch
          %290 = sbr.rel (%p288) target = $region44
        $region43: #{tpu_custom_call.1} parent=11 // pred_region
          _
        $region44: #{tpu_custom_call.1} parent=11 // pred_fallthru
          _
      $region12: #{tpu_custom_call.1} parent=5 // pred_fallthru
        _
      %p291 = scmp.lt.s32.totalorder %s18, 4
      // Predicated region
      $region45: #{tpu_custom_call.1} parent=5 // pred_check
        %p292 = pneg %p291
      $region46: #{tpu_custom_call.1} parent=5 // pred_check_branch
        %294 = sbr.rel (%p292) target = $region48
      $region47: #{tpu_custom_call.1} parent=5 // pred_region
        // Predicated region
        $region49: #{tpu_custom_call.1} parent=47 // pred_check
          %p295 = pneg %p50
        $region50: #{tpu_custom_call.1} parent=47 // pred_check_branch
          %297 = sbr.rel (%p295) target = $region52
        $region51: #{tpu_custom_call.1} parent=47 // pred_region
          %p298 = scmp.lt.s32.totalorder %s25, 1
          %s299 = scalar_select %p298, %s25, 1
          %s300 = smul.addr %s299, 4
          %s301 = smul.addr %s300, 4
          %s302 = scalar_lea.vmem %s0, %s301
        $region52: #{tpu_custom_call.1} parent=47 // pred_fallthru
          _
      $region48: #{tpu_custom_call.1} parent=5 // pred_fallthru
        _
      %p303 = scmp.le.s32.totalorder 1, %s18
      %p304 = scmp.lt.s32.totalorder %s18, 5
      %p305 = pnand %p303, %p304
      %p306 = pneg %p305
      // Predicated region
      $region53: #{tpu_custom_call.1} parent=5 // pred_check
        _
      $region54: #{tpu_custom_call.1} parent=5 // pred_check_branch
        %308 = sbr.rel (%p305) target = $region56
      $region55: #{tpu_custom_call.1} parent=5 // pred_region
        %s309 = ssub.s32 %s18, 1
        %p310 = scmp.lt.s32.totalorder %s27, 1
        %s311 = scalar_select %p310, %s27, 1
        %s312 = smul.addr %s311, 4
        %s313 = smul.addr %s312, 4
        %s314 = scalar_lea.vmem %s0, %s313
        %p315 = pneg %p56
        %p316 = pneg %p53
        %p317 = pneg %p77
        %p318 = pneg %p74
        %p319 = pneg %p98
        %p320 = pneg %p95
        %p321 = pneg %p119
        %p322 = pneg %p116
        %p323 = pneg %p140
        %p324 = pneg %p137
        %p325 = pneg %p161
        %p326 = pneg %p158
        %p327 = pneg %p182
        %p328 = pneg %p179
        %p329 = pneg %p203
        %p330 = pneg %p200
        %p331 = pneg %p224
        %p332 = pneg %p221
        %p333 = pneg %p252
        %p334 = pneg %p249
        %s335 = sand.u32 %s239, 1
        %s336 = scalar_lea.sflag [#allocation7], %s335
        %s337 = sand.u32 %s239, 1
        %s338 = smul.addr %s337, 32
        %s339 = scalar_lea.vmem [#allocation6], %s338
        %p340 = scmp.lt.s32.totalorder %s27, 1
        %s341 = scalar_select %p340, %s27, 1
        %s342 = smul.addr %s341, 4
        %s343 = smul.addr %s342, 4
        %s344 = scalar_lea.vmem %s0, %s343
        %p346 = scmp.eq.s32.totalorder %s28, 0
        // Predicated region
        $region57: #{tpu_custom_call.1} parent=55 // pred_check
          %p347 = pneg %p346
        $region58: #{tpu_custom_call.1} parent=55 // pred_check_branch
          %349 = sbr.rel (%p347) target = $region60
        $region59: #{tpu_custom_call.1} parent=55 // pred_region
          %v350 = vld [vmem:[%s344] sm:$0xff]
          %v351 = vld [vmem:[%s344 + $0x8] sm:$0xff]
          %v352 = vld [vmem:[%s4] sm:$0xf]
          %v353 = vld [vmem:[%s4 + $0x4] sm:$0xf]
          %v354 = vld [vmem:[%s4 + $0x8] sm:$0xf]
          %v355 = vld [vmem:[%s4 + $0xc] sm:$0xf]
          %v360 = vunpack.c.l.b16 %v352
          %v361 = vunpack.c.l.b16 %v353
          %v362 = vunpack.c.l.b16 %v354
          %v363 = vunpack.c.l.b16 %v355
          %v364 = vpack.c.b16 %v361, %v360
          %v365 = vpack.c.b16 %v363, %v362
          %v368 = vunpack.c.l.b16 %v350
          %v369 = vunpack.c.h.b16 %v350
          %v370 = vunpack.c.l.b16 %v351
          %v371 = vunpack.c.h.b16 %v351
          %v372 = vpack.c.b16 %v370, %v368
          %v373 = vpack.c.b16 %v371, %v369
          %vm376 = vcmask 130048
          %v378 = vsel %vm376, %v364, 0
          %v381 = vsel %vm376, %v365, 0
          %383 = vmatprep.subr.bf16.mxu0 %v373
          %384 = vmatpush1.bf16.msra.mxu0 %v372
          %385 = vmatprep.subr.bf16.mxu0 0
          %386 = vmatpush1.bf16.msra.mxu0 0
          %387 = vmatprep.subr.bf16.mxu0 0
          %388 = vmatpush1.bf16.msra.mxu0 0
          %389 = vmatprep.subr.bf16.mxu0 0
          %390 = vmatpush1.bf16.msra.mxu0 0
          %391 = vmatprep.subr.bf16.mxu0 0
          %392 = vmatpush1.bf16.msra.mxu0 0
          %393 = vmatprep.subr.bf16.mxu0 0
          %394 = vmatpush1.bf16.msra.mxu0 0
          %395 = vmatprep.subr.bf16.mxu0 0
          %396 = vmatpush1.bf16.msra.mxu0 0
          %397 = vmatprep.subr.bf16.mxu0 0
          %398 = vmatpush1.bf16.msra.mxu0 0
          %399 = vmatprep.subr.bf16.mxu0 0
          %400 = vmatpush1.bf16.msra.mxu0 0
          %401 = vmatprep.subr.bf16.mxu0 0
          %402 = vmatpush1.bf16.msra.mxu0 0
          %403 = vmatprep.subr.bf16.mxu0 0
          %404 = vmatpush1.bf16.msra.mxu0 0
          %405 = vmatprep.subr.bf16.mxu0 0
          %406 = vmatpush1.bf16.msra.mxu0 0
          %407 = vmatprep.subr.bf16.mxu0 0
          %408 = vmatpush1.bf16.msra.mxu0 0
          %409 = vmatprep.subr.bf16.mxu0 0
          %410 = vmatpush1.bf16.msra.mxu0 0
          %411 = vmatprep.subr.bf16.mxu0 0
          %412 = vmatpush1.bf16.msra.mxu0 0
          %413 = vmatprep.subr.bf16.mxu0 0
          %414 = vmatpush1.bf16.msra.mxu0 0
          %415 = vmatprep.mubr.bf16.mxu0 0
          %416 = vmatmul.mubr.bf16.gmra.mrb[0].mxu0 %v378
          %v417 = vpop.f32.mrb[0].mxu0
          %v418 = vadd.f32 0.0, %v417
          %v419 = vpop.f32.mrb[0].mxu0
          %v420 = vadd.f32 0.0, %v419
          %v421 = vpop.f32.mrb[0].mxu0
          %v422 = vadd.f32 0.0, %v421
          %v423 = vpop.f32.mrb[0].mxu0
          %v424 = vadd.f32 0.0, %v423
          %425 = vmatprep.mubr.bf16.mxu0 0
          %426 = vmatmul.mubr.bf16.gmra.mrb[0].mxu0 %v381
          %v427 = vpop.f32.mrb[0].mxu0
          %v428 = vadd.f32 0.0, %v427
          %v429 = vpop.f32.mrb[0].mxu0
          %v430 = vadd.f32 0.0, %v429
          %v431 = vpop.f32.mrb[0].mxu0
          %v432 = vadd.f32 0.0, %v431
          %v433 = vpop.f32.mrb[0].mxu0
          %v434 = vadd.f32 0.0, %v433
          %435 = vdwg.mxu0
          %v436 = vld [vmem:[%s5] sm:$0xff]
          %v437 = vld [vmem:[%s5 + $0x8] sm:$0xff]
          %v438 = vld [vmem:[%s5 + $0x10] sm:$0xff]
          %v439 = vld [vmem:[%s5 + $0x18] sm:$0xff]
          %441 = vset.pattern.permute.xlu0 0
          %442 = vperm.xlu0 %441, %v436
          %v443 = vpop.permute.xlu0 %442
          %446 = vset.pattern.permute.xlu0 0
          %447 = vperm.xlu0 %446, %v437
          %v448 = vpop.permute.xlu0 %447
          %451 = vset.pattern.permute.xlu0 0
          %452 = vperm.xlu0 %451, %v438
          %v453 = vpop.permute.xlu0 %452
          %456 = vset.pattern.permute.xlu0 0
          %457 = vperm.xlu0 %456, %v439
          %v458 = vpop.permute.xlu0 %457
          %v460 = vmul.f32 %v418, %v443
          %v461 = vmul.f32 %v420, %v443
          %v462 = vmul.f32 %v422, %v448
          %v463 = vmul.f32 %v424, %v448
          %v464 = vmul.f32 %v428, %v453
          %v465 = vmul.f32 %v430, %v453
          %v466 = vmul.f32 %v432, %v458
          %v467 = vmul.f32 %v434, %v458
          %v468 = vld [vmem:[%s6] sm:$0xff]
          %v469 = vld [vmem:[%s6 + $0x8] sm:$0xff]
          %v470 = vld [vmem:[%s6 + $0x10] sm:$0xff]
          %v471 = vld [vmem:[%s6 + $0x18] sm:$0xff]
          %473 = vset.pattern.permute.xlu0 0
          %474 = vperm.xlu0 %473, %v468
          %v475 = vpop.permute.xlu0 %474
          %478 = vset.pattern.permute.xlu0 0
          %479 = vperm.xlu0 %478, %v469
          %v480 = vpop.permute.xlu0 %479
          %483 = vset.pattern.permute.xlu0 0
          %484 = vperm.xlu0 %483, %v470
          %v485 = vpop.permute.xlu0 %484
          %488 = vset.pattern.permute.xlu0 0
          %489 = vperm.xlu0 %488, %v471
          %v490 = vpop.permute.xlu0 %489
          %v492 = vadd.f32 %v460, %v475
          %v493 = vadd.f32 %v461, %v475
          %v494 = vadd.f32 %v462, %v480
          %v495 = vadd.f32 %v463, %v480
          %v496 = vadd.f32 %v464, %v485
          %v497 = vadd.f32 %v465, %v485
          %v498 = vadd.f32 %v466, %v490
          %v499 = vadd.f32 %v467, %v490
          %v500 = vmax.f32 %v492, 0.0
          %v501 = vmax.f32 %v493, 0.0
          %v502 = vmax.f32 %v494, 0.0
          %v503 = vmax.f32 %v495, 0.0
          %v504 = vmax.f32 %v496, 0.0
          %v505 = vmax.f32 %v497, 0.0
          %v506 = vmax.f32 %v498, 0.0
          %v507 = vmax.f32 %v499, 0.0
          %v508 = vpack.c.bf16 %v502, %v500
          %v509 = vpack.c.bf16 %v503, %v501
          %v510 = vpack.c.bf16 %v506, %v504
          %v511 = vpack.c.bf16 %v507, %v505
          %512 = vst [vmem:[#allocation2] sm:$0xff] %v508
          %513 = vst [vmem:[#allocation2 + $0x8] sm:$0xff] %v509
          %514 = vst [vmem:[#allocation2 + $0x10] sm:$0xff] %v510
          %515 = vst [vmem:[#allocation2 + $0x18] sm:$0xff] %v511
          %v516 = vld [vmem:[%s7] sm:$0xf]
          %v517 = vld [vmem:[%s7 + $0x4] sm:$0xf]
          %v518 = vld [vmem:[%s7 + $0x8] sm:$0xf]
          %v519 = vld [vmem:[%s7 + $0xc] sm:$0xf]
          %v520 = vld [vmem:[%s7 + $0x10] sm:$0xf]
          %v521 = vld [vmem:[%s7 + $0x14] sm:$0xf]
          %v522 = vld [vmem:[%s7 + $0x18] sm:$0xf]
          %v523 = vld [vmem:[%s7 + $0x1c] sm:$0xf]
          %v524 = vld [vmem:[%s8] sm:$0xff]
          %v525 = vld [vmem:[%s8 + $0x8] sm:$0xff]
          %v526 = vld [vmem:[%s8 + $0x10] sm:$0xff]
          %v527 = vld [vmem:[%s8 + $0x18] sm:$0xff]
          %v528 = vld [vmem:[%s8 + $0x20] sm:$0xff]
          %v529 = vld [vmem:[%s8 + $0x28] sm:$0xff]
          %v530 = vld [vmem:[%s8 + $0x30] sm:$0xff]
          %v531 = vld [vmem:[%s8 + $0x38] sm:$0xff]
          %533 = vset.pattern.permute.xlu0 0
          %534 = vperm.xlu0 %533, %v524
          %v535 = vpop.permute.xlu0 %534
          %538 = vset.pattern.permute.xlu0 0
          %539 = vperm.xlu0 %538, %v525
          %v540 = vpop.permute.xlu0 %539
          %543 = vset.pattern.permute.xlu0 0
          %544 = vperm.xlu0 %543, %v526
          %v545 = vpop.permute.xlu0 %544
          %548 = vset.pattern.permute.xlu0 0
          %549 = vperm.xlu0 %548, %v527
          %v550 = vpop.permute.xlu0 %549
          %553 = vset.pattern.permute.xlu0 0
          %554 = vperm.xlu0 %553, %v528
          %v555 = vpop.permute.xlu0 %554
          %558 = vset.pattern.permute.xlu0 0
          %559 = vperm.xlu0 %558, %v529
          %v560 = vpop.permute.xlu0 %559
          %563 = vset.pattern.permute.xlu0 0
          %564 = vperm.xlu0 %563, %v530
          %v565 = vpop.permute.xlu0 %564
          %568 = vset.pattern.permute.xlu0 0
          %569 = vperm.xlu0 %568, %v531
          %v570 = vpop.permute.xlu0 %569
          %v580 = vunpack.c.l.b16 %v516
          %v581 = vunpack.c.l.b16 %v517
          %v582 = vunpack.c.l.b16 %v518
          %v583 = vunpack.c.l.b16 %v519
          %v584 = vunpack.c.l.b16 %v520
          %v585 = vunpack.c.l.b16 %v521
          %v586 = vunpack.c.l.b16 %v522
          %v587 = vunpack.c.l.b16 %v523
          %v588 = vpack.c.b16 %v581, %v580
          %v589 = vpack.c.b16 %v583, %v582
          %v590 = vpack.c.b16 %v585, %v584
          %v591 = vpack.c.b16 %v587, %v586
          %vm592 = vcmask 261120
          %v594 = vsel %vm592, %v588, 0
          %v597 = vsel %vm592, %v589, 0
          %v600 = vsel %vm592, %v590, 0
          %v603 = vsel %vm592, %v591, 0
          %605 = vmatprep.subr.bf16.mxu0 %v509
          %606 = vmatpush1.bf16.msra.mxu0 %v508
          %607 = vmatprep.subr.bf16.mxu0 %v511
          %608 = vmatpush1.bf16.msra.mxu0 %v510
          %609 = vmatprep.subr.bf16.mxu0 0
          %610 = vmatpush1.bf16.msra.mxu0 0
          %611 = vmatprep.subr.bf16.mxu0 0
          %612 = vmatpush1.bf16.msra.mxu0 0
          %613 = vmatprep.subr.bf16.mxu0 0
          %614 = vmatpush1.bf16.msra.mxu0 0
          %615 = vmatprep.subr.bf16.mxu0 0
          %616 = vmatpush1.bf16.msra.mxu0 0
          %617 = vmatprep.subr.bf16.mxu0 0
          %618 = vmatpush1.bf16.msra.mxu0 0
          %619 = vmatprep.subr.bf16.mxu0 0
          %620 = vmatpush1.bf16.msra.mxu0 0
          %621 = vmatprep.subr.bf16.mxu0 0
          %622 = vmatpush1.bf16.msra.mxu0 0
          %623 = vmatprep.subr.bf16.mxu0 0
          %624 = vmatpush1.bf16.msra.mxu0 0
          %625 = vmatprep.subr.bf16.mxu0 0
          %626 = vmatpush1.bf16.msra.mxu0 0
          %627 = vmatprep.subr.bf16.mxu0 0
          %628 = vmatpush1.bf16.msra.mxu0 0
          %629 = vmatprep.subr.bf16.mxu0 0
          %630 = vmatpush1.bf16.msra.mxu0 0
          %631 = vmatprep.subr.bf16.mxu0 0
          %632 = vmatpush1.bf16.msra.mxu0 0
          %633 = vmatprep.subr.bf16.mxu0 0
          %634 = vmatpush1.bf16.msra.mxu0 0
          %635 = vmatprep.subr.bf16.mxu0 0
          %636 = vmatpush1.bf16.msra.mxu0 0
          %637 = vmatprep.mubr.bf16.mxu0 0
          %638 = vmatmul.mubr.bf16.gmra.mrb[0].mxu0 %v594
          %v639 = vpop.f32.mrb[0].mxu0
          %v640 = vadd.f32 %v535, %v639
          %v641 = vpop.f32.mrb[0].mxu0
          %v642 = vadd.f32 %v535, %v641
          %v643 = vpop.f32.mrb[0].mxu0
          %v644 = vadd.f32 %v540, %v643
          %v645 = vpop.f32.mrb[0].mxu0
          %v646 = vadd.f32 %v540, %v645
          %647 = vmatprep.mubr.bf16.mxu0 0
          %648 = vmatmul.mubr.bf16.gmra.mrb[0].mxu0 %v597
          %v649 = vpop.f32.mrb[0].mxu0
          %v650 = vadd.f32 %v545, %v649
          %v651 = vpop.f32.mrb[0].mxu0
          %v652 = vadd.f32 %v545, %v651
          %v653 = vpop.f32.mrb[0].mxu0
          %v654 = vadd.f32 %v550, %v653
          %v655 = vpop.f32.mrb[0].mxu0
          %v656 = vadd.f32 %v550, %v655
          %657 = vmatprep.mubr.bf16.mxu0 0
          %658 = vmatmul.mubr.bf16.gmra.mrb[0].mxu0 %v600
          %v659 = vpop.f32.mrb[0].mxu0
          %v660 = vadd.f32 %v555, %v659
          %v661 = vpop.f32.mrb[0].mxu0
          %v662 = vadd.f32 %v555, %v661
          %v663 = vpop.f32.mrb[0].mxu0
          %v664 = vadd.f32 %v560, %v663
          %v665 = vpop.f32.mrb[0].mxu0
          %v666 = vadd.f32 %v560, %v665
          %667 = vmatprep.mubr.bf16.mxu0 0
          %668 = vmatmul.mubr.bf16.gmra.mrb[0].mxu0 %v603
          %v669 = vpop.f32.mrb[0].mxu0
          %v670 = vadd.f32 %v565, %v669
          %v671 = vpop.f32.mrb[0].mxu0
          %v672 = vadd.f32 %v565, %v671
          %v673 = vpop.f32.mrb[0].mxu0
          %v674 = vadd.f32 %v570, %v673
          %v675 = vpop.f32.mrb[0].mxu0
          %v676 = vadd.f32 %v570, %v675
          %677 = vdwg.mxu0
          %v678 = vpack.c.bf16 %v644, %v640
          %v679 = vpack.c.bf16 %v646, %v642
          %680 = vst [vmem:[#allocation3] sm:$0xff] %v678
          %681 = vst [vmem:[#allocation3 + $0x8] sm:$0xff] %v679
          %v682 = vpack.c.bf16 %v654, %v650
          %v683 = vpack.c.bf16 %v656, %v652
          %684 = vst [vmem:[#allocation4] sm:$0xff] %v682
          %685 = vst [vmem:[#allocation4 + $0x8] sm:$0xff] %v683
          %v686 = vpack.c.bf16 %v664, %v660
          %v687 = vpack.c.bf16 %v666, %v662
          %v688 = vpack.c.bf16 %v674, %v670
          %v689 = vpack.c.bf16 %v676, %v672
          %690 = vst [vmem:[#allocation5] sm:$0xff] %v686
          %691 = vst [vmem:[#allocation5 + $0x8] sm:$0xff] %v687
          %692 = vst [vmem:[#allocation5 + $0x10] sm:$0xff] %v688
          %693 = vst [vmem:[#allocation5 + $0x18] sm:$0xff] %v689
        $region60: #{tpu_custom_call.1} parent=55 // pred_fallthru
          _
        %s694 = smul.u32 %s28, 128
        %s695 = sshra.s32 %s694, 7
        %s696 = sand.u32 %s694, 127
        %s697 = smul.addr %s695, 4
        %s698 = scalar_lea.vmem %s344, %s697
        %v699 = vld [vmem:[%s698] sm:$0xf]
        %v700 = vld [vmem:[%s698 + $0x8] sm:$0xf]
        %v701 = vld [vmem:[%s1] sm:$0xf]
        %v702 = vld [vmem:[%s1 + $0x4] sm:$0xf]
        %v703 = vld [vmem:[%s1 + $0x8] sm:$0xf]
        %v704 = vld [vmem:[%s1 + $0xc] sm:$0xf]
        %v709 = vunpack.c.l.b16 %v701
        %v710 = vunpack.c.l.b16 %v702
        %v711 = vunpack.c.l.b16 %v703
        %v712 = vunpack.c.l.b16 %v704
        %v713 = vpack.c.b16 %v710, %v709
        %v714 = vpack.c.b16 %v712, %v711
        %v717 = vunpack.c.l.b16 %v699
        %v718 = vunpack.c.l.b16 %v700
        %v719 = vpack.c.b16 %v718, %v717
        %vm721 = vcmask 130048
        %v723 = vsel %vm721, %v713, 0
        %v726 = vsel %vm721, %v714, 0
        %728 = vmatprep.subr.bf16.mxu0 0
        %729 = vmatpush1.bf16.msra.mxu0 %v719
        %730 = vmatprep.subr.bf16.mxu0 0
        %731 = vmatpush1.bf16.msra.mxu0 0
        %732 = vmatprep.subr.bf16.mxu0 0
        %733 = vmatpush1.bf16.msra.mxu0 0
        %734 = vmatprep.subr.bf16.mxu0 0
        %735 = vmatpush1.bf16.msra.mxu0 0
        %736 = vmatprep.subr.bf16.mxu0 0
        %737 = vmatpush1.bf16.msra.mxu0 0
        %738 = vmatprep.subr.bf16.mxu0 0
        %739 = vmatpush1.bf16.msra.mxu0 0
        %740 = vmatprep.subr.bf16.mxu0 0
        %741 = vmatpush1.bf16.msra.mxu0 0
        %742 = vmatprep.subr.bf16.mxu0 0
        %743 = vmatpush1.bf16.msra.mxu0 0
        %744 = vmatprep.subr.bf16.mxu0 0
        %745 = vmatpush1.bf16.msra.mxu0 0
        %746 = vmatprep.subr.bf16.mxu0 0
        %747 = vmatpush1.bf16.msra.mxu0 0
        %748 = vmatprep.subr.bf16.mxu0 0
        %749 = vmatpush1.bf16.msra.mxu0 0
        %750 = vmatprep.subr.bf16.mxu0 0
        %751 = vmatpush1.bf16.msra.mxu0 0
        %752 = vmatprep.subr.bf16.mxu0 0
        %753 = vmatpush1.bf16.msra.mxu0 0
        %754 = vmatprep.subr.bf16.mxu0 0
        %755 = vmatpush1.bf16.msra.mxu0 0
        %756 = vmatprep.subr.bf16.mxu0 0
        %757 = vmatpush1.bf16.msra.mxu0 0
        %758 = vmatprep.subr.bf16.mxu0 0
        %759 = vmatpush1.bf16.msra.mxu0 0
        %760 = vmatprep.mubr.bf16.mxu0 0
        %761 = vmatmul.mubr.bf16.gmra.mrb[0].mxu0 %v723
        %v762 = vpop.f32.mrb[0].mxu0
        %v763 = vadd.f32 0.0, %v762
        %v764 = vpop.f32.mrb[0].mxu0
        %v765 = vpop.f32.mrb[0].mxu0
        %v766 = vadd.f32 0.0, %v765
        %v767 = vpop.f32.mrb[0].mxu0
        %768 = vmatprep.mubr.bf16.mxu0 0
        %769 = vmatmul.mubr.bf16.gmra.mrb[0].mxu0 %v726
        %v770 = vpop.f32.mrb[0].mxu0
        %v771 = vadd.f32 0.0, %v770
        %v772 = vpop.f32.mrb[0].mxu0
        %v773 = vpop.f32.mrb[0].mxu0
        %v774 = vadd.f32 0.0, %v773
        %v775 = vpop.f32.mrb[0].mxu0
        %776 = vdwg.mxu0
        %v777 = vld [vmem:[%s2] sm:$0xff]
        %v778 = vld [vmem:[%s2 + $0x8] sm:$0xff]
        %v779 = vld [vmem:[%s2 + $0x10] sm:$0xff]
        %v780 = vld [vmem:[%s2 + $0x18] sm:$0xff]
        %782 = vset.pattern.permute.xlu0 0
        %783 = vperm.xlu0 %782, %v777
        %v784 = vpop.permute.xlu0 %783
        %787 = vset.pattern.permute.xlu0 0
        %788 = vperm.xlu0 %787, %v778
        %v789 = vpop.permute.xlu0 %788
        %792 = vset.pattern.permute.xlu0 0
        %793 = vperm.xlu0 %792, %v779
        %v794 = vpop.permute.xlu0 %793
        %797 = vset.pattern.permute.xlu0 0
        %798 = vperm.xlu0 %797, %v780
        %v799 = vpop.permute.xlu0 %798
        %v801 = vmul.f32 %v763, %v784
        %v802 = vmul.f32 %v766, %v789
        %v803 = vmul.f32 %v771, %v794
        %v804 = vmul.f32 %v774, %v799
        %v805 = vld [vmem:[%s3] sm:$0xff]
        %v806 = vld [vmem:[%s3 + $0x8] sm:$0xff]
        %v807 = vld [vmem:[%s3 + $0x10] sm:$0xff]
        %v808 = vld [vmem:[%s3 + $0x18] sm:$0xff]
        %810 = vset.pattern.permute.xlu0 0
        %811 = vperm.xlu0 %810, %v805
        %v812 = vpop.permute.xlu0 %811
        %815 = vset.pattern.permute.xlu0 0
        %816 = vperm.xlu0 %815, %v806
        %v817 = vpop.permute.xlu0 %816
        %820 = vset.pattern.permute.xlu0 0
        %821 = vperm.xlu0 %820, %v807
        %v822 = vpop.permute.xlu0 %821
        %825 = vset.pattern.permute.xlu0 0
        %826 = vperm.xlu0 %825, %v808
        %v827 = vpop.permute.xlu0 %826
        %v829 = vadd.f32 %v801, %v812
        %v830 = vadd.f32 %v802, %v817
        %v831 = vadd.f32 %v803, %v822
        %v832 = vadd.f32 %v804, %v827
        %v833 = vmax.f32 %v829, 0.0
        %v834 = vmax.f32 %v830, 0.0
        %v835 = vmax.f32 %v831, 0.0
        %v836 = vmax.f32 %v832, 0.0
        %s837 = smul.addr %s695, 8
        %s838 = scalar_lea.vmem [#allocation2], %s837
        %v839 = vld [vmem:[%s838] sm:$0xff]
        %v840 = vld [vmem:[%s838 + $0x10] sm:$0xff]
        %s841 = smul.addr %s695, 8
        %s842 = scalar_lea.vmem [#allocation3], %s841
        %v843 = vld [vmem:[%s842] sm:$0xff]
        %v844 = vld [vmem:[#allocation4] sm:$0xff]
        %v845 = vld [vmem:[#allocation4 + $0x8] sm:$0xff]
        %846 = vxpose.xlu0.c.b16.start [1/8] %v843, 128
        %847 = vxpose.xlu0.c.b16.cont [2/8] 0, 128
        %848 = vxpose.xlu0.c.b16.cont [3/8] 0, 128
        %849 = vxpose.xlu0.c.b16.cont [4/8] 0, 128
        %850 = vxpose.xlu0.c.b16.cont [5/8] 0, 128
        %851 = vxpose.xlu0.c.b16.cont [6/8] 0, 128
        %852 = vxpose.xlu0.c.b16.cont [7/8] 0, 128
        %853 = vxpose.xlu0.c.b16.end [8/8] 0, 128
        %v854 = vpop.trf.xlu0
        %v855 = vpop.trf.xlu0
        %v856 = vpop.trf.xlu0
        %v857 = vpop.trf.xlu0
        %v858 = vpop.trf.xlu0
        %v859 = vpop.trf.xlu0
        %v860 = vpop.trf.xlu0
        %v861 = vpop.trf.xlu0
        %v863 = vsel %vm721, %v854, 0
        %v866 = vsel %vm721, %v855, 0
        %v869 = vsel %vm721, %v856, 0
        %v872 = vsel %vm721, %v857, 0
        %v875 = vsel %vm721, %v858, 0
        %v878 = vsel %vm721, %v859, 0
        %v881 = vsel %vm721, %v860, 0
        %v884 = vsel %vm721, %v861, 0
        %886 = vmatprep.subr.bf16.mxu0 %v845
        %887 = vmatpush1.bf16.msra.mxu0 %v844
        %888 = vmatprep.subr.bf16.mxu0 0
        %889 = vmatpush1.bf16.msra.mxu0 0
        %890 = vmatprep.subr.bf16.mxu0 0
        %891 = vmatpush1.bf16.msra.mxu0 0
        %892 = vmatprep.subr.bf16.mxu0 0
        %893 = vmatpush1.bf16.msra.mxu0 0
        %894 = vmatprep.subr.bf16.mxu0 0
        %895 = vmatpush1.bf16.msra.mxu0 0
        %896 = vmatprep.subr.bf16.mxu0 0
        %897 = vmatpush1.bf16.msra.mxu0 0
        %898 = vmatprep.subr.bf16.mxu0 0
        %899 = vmatpush1.bf16.msra.mxu0 0
        %900 = vmatprep.subr.bf16.mxu0 0
        %901 = vmatpush1.bf16.msra.mxu0 0
        %902 = vmatprep.subr.bf16.mxu0 0
        %903 = vmatpush1.bf16.msra.mxu0 0
        %904 = vmatprep.subr.bf16.mxu0 0
        %905 = vmatpush1.bf16.msra.mxu0 0
        %906 = vmatprep.subr.bf16.mxu0 0
        %907 = vmatpush1.bf16.msra.mxu0 0
        %908 = vmatprep.subr.bf16.mxu0 0
        %909 = vmatpush1.bf16.msra.mxu0 0
        %910 = vmatprep.subr.bf16.mxu0 0
        %911 = vmatpush1.bf16.msra.mxu0 0
        %912 = vmatprep.subr.bf16.mxu0 0
        %913 = vmatpush1.bf16.msra.mxu0 0
        %914 = vmatprep.subr.bf16.mxu0 0
        %915 = vmatpush1.bf16.msra.mxu0 0
        %916 = vmatprep.subr.bf16.mxu0 0
        %917 = vmatpush1.bf16.msra.mxu0 0
        %918 = vmatprep.mubr.bf16.mxu0 0
        %919 = vmatmul.mubr.bf16.gmra.mrb[0].mxu0 %v863
        %v920 = vpop.f32.mrb[0].mxu0
        %v921 = vadd.f32 0.0, %v920
        %v922 = vpop.f32.mrb[0].mxu0
        %v923 = vadd.f32 0.0, %v922
        %v924 = vpop.f32.mrb[0].mxu0
        %v925 = vadd.f32 0.0, %v924
        %v926 = vpop.f32.mrb[0].mxu0
        %v927 = vadd.f32 0.0, %v926
        %928 = vmatprep.mubr.bf16.mxu0 0
        %929 = vmatmul.mubr.bf16.gmra.mrb[0].mxu0 %v866
        %v930 = vpop.f32.mrb[0].mxu0
        %v931 = vadd.f32 0.0, %v930
        %v932 = vpop.f32.mrb[0].mxu0
        %v933 = vadd.f32 0.0, %v932
        %v934 = vpop.f32.mrb[0].mxu0
        %v935 = vadd.f32 0.0, %v934
        %v936 = vpop.f32.mrb[0].mxu0
        %v937 = vadd.f32 0.0, %v936
        %938 = vmatprep.mubr.bf16.mxu0 0
        %939 = vmatmul.mubr.bf16.gmra.mrb[0].mxu0 %v869
        %v940 = vpop.f32.mrb[0].mxu0
        %v941 = vadd.f32 0.0, %v940
        %v942 = vpop.f32.mrb[0].mxu0
        %v943 = vadd.f32 0.0, %v942
        %v944 = vpop.f32.mrb[0].mxu0
        %v945 = vadd.f32 0.0, %v944
        %v946 = vpop.f32.mrb[0].mxu0
        %v947 = vadd.f32 0.0, %v946
        %948 = vmatprep.mubr.bf16.mxu0 0
        %949 = vmatmul.mubr.bf16.gmra.mrb[0].mxu0 %v872
        %v950 = vpop.f32.mrb[0].mxu0
        %v951 = vadd.f32 0.0, %v950
        %v952 = vpop.f32.mrb[0].mxu0
        %v953 = vadd.f32 0.0, %v952
        %v954 = vpop.f32.mrb[0].mxu0
        %v955 = vadd.f32 0.0, %v954
        %v956 = vpop.f32.mrb[0].mxu0
        %v957 = vadd.f32 0.0, %v956
        %958 = vmatprep.mubr.bf16.mxu0 0
        %959 = vmatmul.mubr.bf16.gmra.mrb[0].mxu0 %v875
        %v960 = vpop.f32.mrb[0].mxu0
        %v961 = vadd.f32 0.0, %v960
        %v962 = vpop.f32.mrb[0].mxu0
        %v963 = vadd.f32 0.0, %v962
        %v964 = vpop.f32.mrb[0].mxu0
        %v965 = vadd.f32 0.0, %v964
        %v966 = vpop.f32.mrb[0].mxu0
        %v967 = vadd.f32 0.0, %v966
        %968 = vmatprep.mubr.bf16.mxu0 0
        %969 = vmatmul.mubr.bf16.gmra.mrb[0].mxu0 %v878
        %v970 = vpop.f32.mrb[0].mxu0
        %v971 = vadd.f32 0.0, %v970
        %v972 = vpop.f32.mrb[0].mxu0
        %v973 = vadd.f32 0.0, %v972
        %v974 = vpop.f32.mrb[0].mxu0
        %v975 = vadd.f32 0.0, %v974
        %v976 = vpop.f32.mrb[0].mxu0
        %v977 = vadd.f32 0.0, %v976
        %978 = vmatprep.mubr.bf16.mxu0 0
        %979 = vmatmul.mubr.bf16.gmra.mrb[0].mxu0 %v881
        %v980 = vpop.f32.mrb[0].mxu0
        %v981 = vadd.f32 0.0, %v980
        %v982 = vpop.f32.mrb[0].mxu0
        %v983 = vadd.f32 0.0, %v982
        %v984 = vpop.f32.mrb[0].mxu0
        %v985 = vadd.f32 0.0, %v984
        %v986 = vpop.f32.mrb[0].mxu0
        %v987 = vadd.f32 0.0, %v986
        %988 = vmatprep.mubr.bf16.mxu0 0
        %989 = vmatmul.mubr.bf16.gmra.mrb[0].mxu0 %v884
        %v990 = vpop.f32.mrb[0].mxu0
        %v991 = vadd.f32 0.0, %v990
        %v992 = vpop.f32.mrb[0].mxu0
        %v993 = vadd.f32 0.0, %v992
        %v994 = vpop.f32.mrb[0].mxu0
        %v995 = vadd.f32 0.0, %v994
        %v996 = vpop.f32.mrb[0].mxu0
        %v997 = vadd.f32 0.0, %v996
        %998 = vdwg.mxu0
        %v999 = vmax.f32 %v921, %v923
        %1000 = vmax.xlane.f32.xlu0 %v999
        %v1001 = vpop.xlane.xlu0 %1000
        %v1002 = vmax.f32 %v925, %v927
        %1003 = vmax.xlane.f32.xlu0 %v1002
        %v1004 = vpop.xlane.xlu0 %1003
        %v1005 = vmax.f32 %v931, %v933
        %1006 = vmax.xlane.f32.xlu0 %v1005
        %v1007 = vpop.xlane.xlu0 %1006
        %v1008 = vmax.f32 %v935, %v937
        %1009 = vmax.xlane.f32.xlu0 %v1008
        %v1010 = vpop.xlane.xlu0 %1009
        %v1011 = vmax.f32 %v941, %v943
        %1012 = vmax.xlane.f32.xlu0 %v1011
        %v1013 = vpop.xlane.xlu0 %1012
        %v1014 = vmax.f32 %v945, %v947
        %1015 = vmax.xlane.f32.xlu0 %v1014
        %v1016 = vpop.xlane.xlu0 %1015
        %v1017 = vmax.f32 %v951, %v953
        %1018 = vmax.xlane.f32.xlu0 %v1017
        %v1019 = vpop.xlane.xlu0 %1018
        %v1020 = vmax.f32 %v955, %v957
        %1021 = vmax.xlane.f32.xlu0 %v1020
        %v1022 = vpop.xlane.xlu0 %1021
        %v1023 = vmax.f32 %v961, %v963
        %1024 = vmax.xlane.f32.xlu0 %v1023
        %v1025 = vpop.xlane.xlu0 %1024
        %v1026 = vmax.f32 %v965, %v967
        %1027 = vmax.xlane.f32.xlu0 %v1026
        %v1028 = vpop.xlane.xlu0 %1027
        %v1029 = vmax.f32 %v971, %v973
        %1030 = vmax.xlane.f32.xlu0 %v1029
        %v1031 = vpop.xlane.xlu0 %1030
        %v1032 = vmax.f32 %v975, %v977
        %1033 = vmax.xlane.f32.xlu0 %v1032
        %v1034 = vpop.xlane.xlu0 %1033
        %v1035 = vmax.f32 %v981, %v983
        %1036 = vmax.xlane.f32.xlu0 %v1035
        %v1037 = vpop.xlane.xlu0 %1036
        %v1038 = vmax.f32 %v985, %v987
        %1039 = vmax.xlane.f32.xlu0 %v1038
        %v1040 = vpop.xlane.xlu0 %1039
        %v1041 = vmax.f32 %v991, %v993
        %1042 = vmax.xlane.f32.xlu0 %v1041
        %v1043 = vpop.xlane.xlu0 %1042
        %v1044 = vmax.f32 %v995, %v997
        %1045 = vmax.xlane.f32.xlu0 %v1044
        %v1046 = vpop.xlane.xlu0 %1045
        %v1047 = vsub.f32 %v921, %v1001
        %v1048 = vsub.f32 %v923, %v1001
        %v1049 = vsub.f32 %v925, %v1004
        %v1050 = vsub.f32 %v927, %v1004
        %v1051 = vsub.f32 %v931, %v1007
        %v1052 = vsub.f32 %v933, %v1007
        %v1053 = vsub.f32 %v935, %v1010
        %v1054 = vsub.f32 %v937, %v1010
        %v1055 = vsub.f32 %v941, %v1013
        %v1056 = vsub.f32 %v943, %v1013
        %v1057 = vsub.f32 %v945, %v1016
        %v1058 = vsub.f32 %v947, %v1016
        %v1059 = vsub.f32 %v951, %v1019
        %v1060 = vsub.f32 %v953, %v1019
        %v1061 = vsub.f32 %v955, %v1022
        %v1062 = vsub.f32 %v957, %v1022
        %v1063 = vsub.f32 %v961, %v1025
        %v1064 = vsub.f32 %v963, %v1025
        %v1065 = vsub.f32 %v965, %v1028
        %v1066 = vsub.f32 %v967, %v1028
        %v1067 = vsub.f32 %v971, %v1031
        %v1068 = vsub.f32 %v973, %v1031
        %v1069 = vsub.f32 %v975, %v1034
        %v1070 = vsub.f32 %v977, %v1034
        %v1071 = vsub.f32 %v981, %v1037
        %v1072 = vsub.f32 %v983, %v1037
        %v1073 = vsub.f32 %v985, %v1040
        %v1074 = vsub.f32 %v987, %v1040
        %v1075 = vsub.f32 %v991, %v1043
        %v1076 = vsub.f32 %v993, %v1043
        %v1077 = vsub.f32 %v995, %v1046
        %v1078 = vsub.f32 %v997, %v1046
        %v1079 = vmul.f32 %v1047, 1.442695
        %v1080 = vpow.pop %v1079
        %v1081 = vmul.f32 %v1048, 1.442695
        %v1082 = vpow.pop %v1081
        %v1083 = vmul.f32 %v1049, 1.442695
        %v1084 = vpow.pop %v1083
        %v1085 = vmul.f32 %v1050, 1.442695
        %v1086 = vpow.pop %v1085
        %v1087 = vmul.f32 %v1051, 1.442695
        %v1088 = vpow.pop %v1087
        %v1089 = vmul.f32 %v1052, 1.442695
        %v1090 = vpow.pop %v1089
        %v1091 = vmul.f32 %v1053, 1.442695
        %v1092 = vpow.pop %v1091
        %v1093 = vmul.f32 %v1054, 1.442695
        %v1094 = vpow.pop %v1093
        %v1095 = vmul.f32 %v1055, 1.442695
        %v1096 = vpow.pop %v1095
        %v1097 = vmul.f32 %v1056, 1.442695
        %v1098 = vpow.pop %v1097
        %v1099 = vmul.f32 %v1057, 1.442695
        %v1100 = vpow.pop %v1099
        %v1101 = vmul.f32 %v1058, 1.442695
        %v1102 = vpow.pop %v1101
        %v1103 = vmul.f32 %v1059, 1.442695
        %v1104 = vpow.pop %v1103
        %v1105 = vmul.f32 %v1060, 1.442695
        %v1106 = vpow.pop %v1105
        %v1107 = vmul.f32 %v1061, 1.442695
        %v1108 = vpow.pop %v1107
        %v1109 = vmul.f32 %v1062, 1.442695
        %v1110 = vpow.pop %v1109
        %v1111 = vmul.f32 %v1063, 1.442695
        %v1112 = vpow.pop %v1111
        %v1113 = vmul.f32 %v1064, 1.442695
        %v1114 = vpow.pop %v1113
        %v1115 = vmul.f32 %v1065, 1.442695
        %v1116 = vpow.pop %v1115
        %v1117 = vmul.f32 %v1066, 1.442695
        %v1118 = vpow.pop %v1117
        %v1119 = vmul.f32 %v1067, 1.442695
        %v1120 = vpow.pop %v1119
        %v1121 = vmul.f32 %v1068, 1.442695
        %v1122 = vpow.pop %v1121
        %v1123 = vmul.f32 %v1069, 1.442695
        %v1124 = vpow.pop %v1123
        %v1125 = vmul.f32 %v1070, 1.442695
        %v1126 = vpow.pop %v1125
        %v1127 = vmul.f32 %v1071, 1.442695
        %v1128 = vpow.pop %v1127
        %v1129 = vmul.f32 %v1072, 1.442695
        %v1130 = vpow.pop %v1129
        %v1131 = vmul.f32 %v1073, 1.442695
        %v1132 = vpow.pop %v1131
        %v1133 = vmul.f32 %v1074, 1.442695
        %v1134 = vpow.pop %v1133
        %v1135 = vmul.f32 %v1075, 1.442695
        %v1136 = vpow.pop %v1135
        %v1137 = vmul.f32 %v1076, 1.442695
        %v1138 = vpow.pop %v1137
        %v1139 = vmul.f32 %v1077, 1.442695
        %v1140 = vpow.pop %v1139
        %v1141 = vmul.f32 %v1078, 1.442695
        %v1142 = vpow.pop %v1141
        %v1143 = vadd.f32 %v1080, %v1082
        %1144 = vadd.xlane.f32.xlu0 %v1143
        %v1145 = vpop.xlane.xlu0 %1144
        %v1146 = vadd.f32 %v1084, %v1086
        %1147 = vadd.xlane.f32.xlu0 %v1146
        %v1148 = vpop.xlane.xlu0 %1147
        %v1149 = vadd.f32 %v1088, %v1090
        %1150 = vadd.xlane.f32.xlu0 %v1149
        %v1151 = vpop.xlane.xlu0 %1150
        %v1152 = vadd.f32 %v1092, %v1094
        %1153 = vadd.xlane.f32.xlu0 %v1152
        %v1154 = vpop.xlane.xlu0 %1153
        %v1155 = vadd.f32 %v1096, %v1098
        %1156 = vadd.xlane.f32.xlu0 %v1155
        %v1157 = vpop.xlane.xlu0 %1156
        %v1158 = vadd.f32 %v1100, %v1102
        %1159 = vadd.xlane.f32.xlu0 %v1158
        %v1160 = vpop.xlane.xlu0 %1159
        %v1161 = vadd.f32 %v1104, %v1106
        %1162 = vadd.xlane.f32.xlu0 %v1161
        %v1163 = vpop.xlane.xlu0 %1162
        %v1164 = vadd.f32 %v1108, %v1110
        %1165 = vadd.xlane.f32.xlu0 %v1164
        %v1166 = vpop.xlane.xlu0 %1165
        %v1167 = vadd.f32 %v1112, %v1114
        %1168 = vadd.xlane.f32.xlu0 %v1167
        %v1169 = vpop.xlane.xlu0 %1168
        %v1170 = vadd.f32 %v1116, %v1118
        %1171 = vadd.xlane.f32.xlu0 %v1170
        %v1172 = vpop.xlane.xlu0 %1171
        %v1173 = vadd.f32 %v1120, %v1122
        %1174 = vadd.xlane.f32.xlu0 %v1173
        %v1175 = vpop.xlane.xlu0 %1174
        %v1176 = vadd.f32 %v1124, %v1126
        %1177 = vadd.xlane.f32.xlu0 %v1176
        %v1178 = vpop.xlane.xlu0 %1177
        %v1179 = vadd.f32 %v1128, %v1130
        %1180 = vadd.xlane.f32.xlu0 %v1179
        %v1181 = vpop.xlane.xlu0 %1180
        %v1182 = vadd.f32 %v1132, %v1134
        %1183 = vadd.xlane.f32.xlu0 %v1182
        %v1184 = vpop.xlane.xlu0 %1183
        %v1185 = vadd.f32 %v1136, %v1138
        %1186 = vadd.xlane.f32.xlu0 %v1185
        %v1187 = vpop.xlane.xlu0 %1186
        %v1188 = vadd.f32 %v1140, %v1142
        %1189 = vadd.xlane.f32.xlu0 %v1188
        %v1190 = vpop.xlane.xlu0 %1189
        %v1191 = vrcp.pop %v1145
        %v1192 = vrcp.pop %v1148
        %v1193 = vrcp.pop %v1151
        %v1194 = vrcp.pop %v1154
        %v1195 = vrcp.pop %v1157
        %v1196 = vrcp.pop %v1160
        %v1197 = vrcp.pop %v1163
        %v1198 = vrcp.pop %v1166
        %v1199 = vrcp.pop %v1169
        %v1200 = vrcp.pop %v1172
        %v1201 = vrcp.pop %v1175
        %v1202 = vrcp.pop %v1178
        %v1203 = vrcp.pop %v1181
        %v1204 = vrcp.pop %v1184
        %v1205 = vrcp.pop %v1187
        %v1206 = vrcp.pop %v1190
        %v1207 = vpack.c.bf16 %v1084, %v1080
        %v1208 = vpack.c.bf16 %v1086, %v1082
        %v1209 = vpack.c.bf16 %v1092, %v1088
        %v1210 = vpack.c.bf16 %v1094, %v1090
        %v1211 = vpack.c.bf16 %v1100, %v1096
        %v1212 = vpack.c.bf16 %v1102, %v1098
        %v1213 = vpack.c.bf16 %v1108, %v1104
        %v1214 = vpack.c.bf16 %v1110, %v1106
        %v1215 = vpack.c.bf16 %v1116, %v1112
        %v1216 = vpack.c.bf16 %v1118, %v1114
        %v1217 = vpack.c.bf16 %v1124, %v1120
        %v1218 = vpack.c.bf16 %v1126, %v1122
        %v1219 = vpack.c.bf16 %v1132, %v1128
        %v1220 = vpack.c.bf16 %v1134, %v1130
        %v1221 = vpack.c.bf16 %v1140, %v1136
        %v1222 = vpack.c.bf16 %v1142, %v1138
        %v1223 = vld [vmem:[#allocation5] sm:$0xff]
        %v1224 = vld [vmem:[#allocation5 + $0x8] sm:$0xff]
        %v1225 = vld [vmem:[#allocation5 + $0x10] sm:$0xff]
        %v1226 = vld [vmem:[#allocation5 + $0x18] sm:$0xff]
        %1227 = vmatprep.subr.bf16.mxu0 %v1208
        %1228 = vmatpush1.bf16.xpose.msra.mxu0 %v1207
        %1229 = vmatprep.subr.bf16.mxu0 %v1210
        %1230 = vmatpush1.bf16.xpose.msra.mxu0 %v1209
        %1231 = vmatprep.subr.bf16.mxu0 %v1212
        %1232 = vmatpush1.bf16.xpose.msra.mxu0 %v1211
        %1233 = vmatprep.subr.bf16.mxu0 %v1214
        %1234 = vmatpush1.bf16.xpose.msra.mxu0 %v1213
        %1235 = vmatprep.subr.bf16.mxu0 %v1216
        %1236 = vmatpush1.bf16.xpose.msra.mxu0 %v1215
        %1237 = vmatprep.subr.bf16.mxu0 %v1218
        %1238 = vmatpush1.bf16.xpose.msra.mxu0 %v1217
        %1239 = vmatprep.subr.bf16.mxu0 %v1220
        %1240 = vmatpush1.bf16.xpose.msra.mxu0 %v1219
        %1241 = vmatprep.subr.bf16.mxu0 %v1222
        %1242 = vmatpush1.bf16.xpose.msra.mxu0 %v1221
        %1243 = vmatprep.subr.bf16.mxu0 0
        %1244 = vmatpush1.bf16.xpose.msra.mxu0 0
        %1245 = vmatprep.subr.bf16.mxu0 0
        %1246 = vmatpush1.bf16.xpose.msra.mxu0 0
        %1247 = vmatprep.subr.bf16.mxu0 0
        %1248 = vmatpush1.bf16.xpose.msra.mxu0 0
        %1249 = vmatprep.subr.bf16.mxu0 0
        %1250 = vmatpush1.bf16.xpose.msra.mxu0 0
        %1251 = vmatprep.subr.bf16.mxu0 0
        %1252 = vmatpush1.bf16.xpose.msra.mxu0 0
        %1253 = vmatprep.subr.bf16.mxu0 0
        %1254 = vmatpush1.bf16.xpose.msra.mxu0 0
        %1255 = vmatprep.subr.bf16.mxu0 0
        %1256 = vmatpush1.bf16.xpose.msra.mxu0 0
        %1257 = vmatprep.subr.bf16.mxu0 0
        %1258 = vmatpush1.bf16.xpose.msra.mxu0 0
        %1259 = vmatprep.mubr.bf16.mxu0 %v1224
        %1260 = vmatmul.mubr.bf16.gmra.mrb[0].mxu0 %v1223
        %v1261 = vpop.f32.mrb[0].mxu0
        %v1262 = vadd.f32 0.0, %v1261
        %v1263 = vpop.f32.mrb[0].mxu0
        %v1264 = vpop.f32.mrb[0].mxu0
        %v1265 = vadd.f32 0.0, %v1264
        %v1266 = vpop.f32.mrb[0].mxu0
        %1267 = vmatprep.mubr.bf16.mxu0 %v1226
        %1268 = vmatmul.mubr.bf16.gmra.mrb[0].mxu0 %v1225
        %v1269 = vpop.f32.mrb[0].mxu0
        %v1270 = vadd.f32 0.0, %v1269
        %v1271 = vpop.f32.mrb[0].mxu0
        %v1272 = vpop.f32.mrb[0].mxu0
        %v1273 = vadd.f32 0.0, %v1272
        %v1274 = vpop.f32.mrb[0].mxu0
        %1275 = vdwg.mxu0
        %v1276 = vunpack.c.l.bf16 %v839
        %v1277 = vunpack.c.h.bf16 %v839
        %v1278 = vunpack.c.l.bf16 %v840
        %v1279 = vunpack.c.h.bf16 %v840
        %v1280 = vmul.f32 %v833, %v1276
        %v1281 = vmul.f32 %v834, %v1277
        %v1282 = vmul.f32 %v835, %v1278
        %v1283 = vmul.f32 %v836, %v1279
        %v1284 = vmul.f32 %v1280, %v1262
        %v1285 = vmul.f32 %v1281, %v1265
        %v1286 = vmul.f32 %v1282, %v1270
        %v1287 = vmul.f32 %v1283, %v1273
        %v1304 = vlaneseq
        %v1305 = vand.u32 %v1304, 127
        %v1306 = vlaneseq
        %v1307 = vshrl.u32 %v1306, 7
        %v1308 = vsub.s32 %v1305, %v1307
        %v1309 = vrot.slane %v1191, %v1308
        %v1310 = vadd.s32 %v1305, 4294967288
        %v1311 = vlaneseq
        %v1312 = vshrl.u32 %v1311, 7
        %v1313 = vsub.s32 %v1310, %v1312
        %v1314 = vrot.slane %v1192, %v1313
        %vm1315 = vcmask 130112
        %v1316 = vsel %vm1315, %v1314, %v1309
        %v1317 = vadd.s32 %v1305, 4294967280
        %v1318 = vlaneseq
        %v1319 = vshrl.u32 %v1318, 7
        %v1320 = vsub.s32 %v1317, %v1319
        %v1321 = vrot.slane %v1193, %v1320
        %vm1322 = vcmask 195712
        %v1323 = vsel %vm1322, %v1321, %v1316
        %v1324 = vadd.s32 %v1305, 4294967272
        %v1325 = vlaneseq
        %v1326 = vshrl.u32 %v1325, 7
        %v1327 = vsub.s32 %v1324, %v1326
        %v1328 = vrot.slane %v1194, %v1327
        %vm1329 = vcmask 261312
        %v1330 = vsel %vm1329, %v1328, %v1323
        %v1331 = vadd.s32 %v1305, 4294967264
        %v1332 = vlaneseq
        %v1333 = vshrl.u32 %v1332, 7
        %v1334 = vsub.s32 %v1331, %v1333
        %v1335 = vrot.slane %v1195, %v1334
        %vm1336 = vcmask 326912
        %v1337 = vsel %vm1336, %v1335, %v1330
        %v1338 = vadd.s32 %v1305, 4294967256
        %v1339 = vlaneseq
        %v1340 = vshrl.u32 %v1339, 7
        %v1341 = vsub.s32 %v1338, %v1340
        %v1342 = vrot.slane %v1196, %v1341
        %vm1343 = vcmask 392512
        %v1344 = vsel %vm1343, %v1342, %v1337
        %v1345 = vadd.s32 %v1305, 4294967248
        %v1346 = vlaneseq
        %v1347 = vshrl.u32 %v1346, 7
        %v1348 = vsub.s32 %v1345, %v1347
        %v1349 = vrot.slane %v1197, %v1348
        %vm1350 = vcmask 458112
        %v1351 = vsel %vm1350, %v1349, %v1344
        %v1352 = vadd.s32 %v1305, 4294967240
        %v1353 = vlaneseq
        %v1354 = vshrl.u32 %v1353, 7
        %v1355 = vsub.s32 %v1352, %v1354
        %v1356 = vrot.slane %v1198, %v1355
        %vm1357 = vcmask 523712
        %v1358 = vsel %vm1357, %v1356, %v1351
        %v1359 = vadd.s32 %v1305, 4294967232
        %v1360 = vlaneseq
        %v1361 = vshrl.u32 %v1360, 7
        %v1362 = vsub.s32 %v1359, %v1361
        %v1363 = vrot.slane %v1199, %v1362
        %vm1364 = vcmask 589312
        %v1365 = vsel %vm1364, %v1363, %v1358
        %v1366 = vadd.s32 %v1305, 4294967224
        %v1367 = vlaneseq
        %v1368 = vshrl.u32 %v1367, 7
        %v1369 = vsub.s32 %v1366, %v1368
        %v1370 = vrot.slane %v1200, %v1369
        %vm1371 = vcmask 654912
        %v1372 = vsel %vm1371, %v1370, %v1365
        %v1373 = vadd.s32 %v1305, 4294967216
        %v1374 = vlaneseq
        %v1375 = vshrl.u32 %v1374, 7
        %v1376 = vsub.s32 %v1373, %v1375
        %v1377 = vrot.slane %v1201, %v1376
        %vm1378 = vcmask 720512
        %v1379 = vsel %vm1378, %v1377, %v1372
        %v1380 = vadd.s32 %v1305, 4294967208
        %v1381 = vlaneseq
        %v1382 = vshrl.u32 %v1381, 7
        %v1383 = vsub.s32 %v1380, %v1382
        %v1384 = vrot.slane %v1202, %v1383
        %vm1385 = vcmask 786112
        %v1386 = vsel %vm1385, %v1384, %v1379
        %v1387 = vadd.s32 %v1305, 4294967200
        %v1388 = vlaneseq
        %v1389 = vshrl.u32 %v1388, 7
        %v1390 = vsub.s32 %v1387, %v1389
        %v1391 = vrot.slane %v1203, %v1390
        %vm1392 = vcmask 851712
        %v1393 = vsel %vm1392, %v1391, %v1386
        %v1394 = vadd.s32 %v1305, 4294967192
        %v1395 = vlaneseq
        %v1396 = vshrl.u32 %v1395, 7
        %v1397 = vsub.s32 %v1394, %v1396
        %v1398 = vrot.slane %v1204, %v1397
        %vm1399 = vcmask 917312
        %v1400 = vsel %vm1399, %v1398, %v1393
        %v1401 = vadd.s32 %v1305, 4294967184
        %v1402 = vlaneseq
        %v1403 = vshrl.u32 %v1402, 7
        %v1404 = vsub.s32 %v1401, %v1403
        %v1405 = vrot.slane %v1205, %v1404
        %vm1406 = vcmask 982912
        %v1407 = vsel %vm1406, %v1405, %v1400
        %v1408 = vadd.s32 %v1305, 4294967176
        %v1409 = vlaneseq
        %v1410 = vshrl.u32 %v1409, 7
        %v1411 = vsub.s32 %v1408, %v1410
        %v1412 = vrot.slane %v1206, %v1411
        %vm1413 = vcmask 1048512
        %v1414 = vsel %vm1413, %v1412, %v1407
        %vm1415 = vcmask 1042434
        %v1416 = vsel %vm1415, %v1414, %v1414
        %vm1417 = vcmask 1043459
        %v1418 = vsel %vm1417, %v1414, %v1416
        %vm1419 = vcmask 1044484
        %v1420 = vsel %vm1419, %v1414, %v1418
        %vm1421 = vcmask 1045509
        %v1422 = vsel %vm1421, %v1414, %v1420
        %vm1423 = vcmask 1046534
        %v1424 = vsel %vm1423, %v1414, %v1422
        %vm1425 = vcmask 1047559
        %v1426 = vsel %vm1425, %v1414, %v1424
        %v1428 = vmul.f32 %v1284, %v1426
        %v1429 = vmul.f32 %v1285, %v1426
        %v1430 = vmul.f32 %v1286, %v1426
        %v1431 = vmul.f32 %v1287, %v1426
        %1432 = vst [vmem:[%s339] sm:$0xff] %v1428
        %1433 = vst [vmem:[%s339 + $0x8] sm:$0xff] %v1429
        %1434 = vst [vmem:[%s339 + $0x10] sm:$0xff] %v1430
        %1435 = vst [vmem:[%s339 + $0x18] sm:$0xff] %v1431
        %s1436 = sand.u32 %s239, 1
        %s1437 = scalar_lea.sflag [#allocation7], %s1436
        %s1438 = sand.u32 %s239, 1
        %s1439 = smul.addr %s1438, 32
        %s1440 = scalar_lea.vmem [#allocation6], %s1439
        // Predicated region
        $region61: #{tpu_custom_call.1} parent=55 // pred_check
          %p1441 = pneg %p249
        $region62: #{tpu_custom_call.1} parent=55 // pred_check_branch
          %1443 = sbr.rel (%p1441) target = $region64
        $region63: #{tpu_custom_call.1} parent=55 // pred_region
          %s1445 = ssub.s32 512, 512
          %1446 = vsyncadd %s1437, %s1445
          %s1447 = smul.addr %s27, 8
          %s1448 = sadd.s32 %s28, %s1447
          %s1449 = smul.addr %s1448, 128
          %s1450 = scalar_lea.hbm %s9, %s1449
          %s1451 = sshll.u32 %s1440, 4
          %s1452 = int_to_ptr.vmem [resolvable:$true] %s1451
          %1457 = dma.vmem_to_hbm [thread:$0]  %s1452, 512, %s1450, %s1437, 128, 256, 8
        $region64: #{tpu_custom_call.1} parent=55 // pred_fallthru
          _
      $region56: #{tpu_custom_call.1} parent=5 // pred_fallthru
        _
      %p1458 = scmp.le.s32.totalorder 2, %s18
      // Predicated region
      $region65: #{tpu_custom_call.1} parent=5 // pred_check
        %p1459 = pneg %p1458
      $region66: #{tpu_custom_call.1} parent=5 // pred_check_branch
        %1461 = sbr.rel (%p1459) target = $region68
      $region67: #{tpu_custom_call.1} parent=5 // pred_region
        %s1462 = ssub.s32 %s18, 2
        // Predicated region
        $region69: #{tpu_custom_call.1} parent=67 // pred_check
          %p1463 = pneg %p255
        $region70: #{tpu_custom_call.1} parent=67 // pred_check_branch
          %1465 = sbr.rel (%p1463) target = $region72
        $region71: #{tpu_custom_call.1} parent=67 // pred_region
          %s1466 = sand.u32 %s240, 1
          %s1467 = scalar_lea.sflag [#allocation7], %s1466
          %s1468 = sand.u32 %s240, 1
          %s1469 = smul.addr %s1468, 32
          %s1470 = scalar_lea.vmem [#allocation6], %s1469
          %1471 = dma.done %s1467, 512
        $region72: #{tpu_custom_call.1} parent=67 // pred_fallthru
          _
      $region68: #{tpu_custom_call.1} parent=5 // pred_fallthru
        _
    $region6: #{tpu_custom_call.1} parent=1 // loop_footer
      %s22 = sadd.s32 1, %s18
    $region7: #{tpu_custom_call.1} parent=1 // loop_footer_branch
      %17 = sbr.rel target = $region3
    $region8: #{tpu_custom_call.1} parent=1 // loop_exit
      _
    %1472 = vsyncpa [#allocation7], 1
    %s1473 = scalar_lea.sflag [#allocation7], 1
    %1474 = vsyncpa %s1473, 1

</llo_original>
